<compile_context>
chip_gen: v6e
topology: v6e:2x2x1
jax: 0.10.0
libtpu: 0.0.40
codegen_flags: <defaults>
</compile_context>

<pallas_src>
import functools

import jax
import jax.numpy as jnp
from jax.experimental import pallas as pl
from jax.experimental.pallas import tpu as pltpu


def _round_up(x, m):
    return (x + m - 1) // m * m


def _padded_bytes(shape, dtype):
    """Layout-padded VMEM bytes: minor dim -> 128 lanes, 2nd-minor -> 8*(4/itemsize)."""
    itemsize = jnp.dtype(dtype).itemsize
    dims = list(shape)
    if not dims:
        return itemsize
    dims[-1] = _round_up(dims[-1], 128)
    if len(dims) >= 2:
        dims[-2] = _round_up(dims[-2], 8 * (4 // itemsize))
    n = 1
    for d in dims:
        n *= int(d)
    return n * itemsize


def _row_ds(start, size, stride):
    if stride == 1:
        return pl.ds(start, size)
    # TODO(synk): stride>1 strided row gather is untested on hardware.
    return pl.ds(start, size, stride)


def _tile_compute(load_rows, w1_ref, b1_ref, w2_ref, b2_ref, w3_ref, b3_ref, o_ref):
    """Shared fused compute for one (th, Wo) output tile.

    load_rows(kh) -> [th, Wo, k*Cin] bf16 rows for conv1 tap-row kh.
    w1_ref: [k, k*Cin, Cpad] bf16  (kw and Cin folded into the contraction dim)
    w2/w3 : [Cpad, Cpad] bf16,  b*: [1, Cpad] f32,  o_ref: [th, Wo, Cpad] bf16
    """
    th, wo, cpad = o_ref.shape
    k, kcin, _ = w1_ref.shape
    m = th * wo

    # conv1: k matmuls with K = k*Cin (kw taps folded into the contraction dim),
    # bf16 operands, f32 accumulation.
    acc = jnp.zeros((m, cpad), jnp.float32)
    for kh in range(k):
        rows = load_rows(kh)                                    # [th, wo, kcin] bf16
        acc = acc + jnp.dot(rows.reshape(m, kcin), w1_ref[kh],
                            preferred_element_type=jnp.float32)

    h = jnp.maximum(acc + b1_ref[...], 0.0).astype(jnp.bfloat16)      # ReLU 1
    h = jnp.dot(h, w2_ref[...], preferred_element_type=jnp.float32)   # 1x1 conv 2
    h = jnp.maximum(h + b2_ref[...], 0.0).astype(jnp.bfloat16)        # ReLU 2
    h = jnp.dot(h, w3_ref[...], preferred_element_type=jnp.float32)   # 1x1 conv 3
    h = jnp.maximum(h + b3_ref[...], 0.0)                             # ReLU 3
    o_ref[...] = h.reshape(th, wo, cpad).astype(o_ref.dtype)


def _nin_kernel_resident(x_ref, w1_ref, b1_ref, w2_ref, b2_ref, w3_ref, b3_ref,
                         o_ref, *, stride):
    """Whole (kw,Cin)-packed image kept resident in VMEM per batch element."""
    th = o_ref.shape[0]
    row0 = pl.multiple_of(pl.program_id(1) * (th * stride), th * stride)

    def load_rows(kh):
        return x_ref[_row_ds(row0 + kh, th, stride), :, :]

    _tile_compute(load_rows, w1_ref, b1_ref, w2_ref, b2_ref, w3_ref, b3_ref, o_ref)


def _nin_kernel_tiled(x_hbm, w1_ref, b1_ref, w2_ref, b2_ref, w3_ref, b3_ref,
                      o_ref, xbuf, *, stride):
    """Fallback for images whose lane-padded slab would not fit VMEM (v7x):
    a (th-1)*stride+k row halo window is DMA'd from HBM into VMEM scratch per step."""
    th = o_ref.shape[0]
    rows_need = xbuf.shape[0]
    b = pl.program_id(0)
    row0 = pl.program_id(1) * (th * stride)
    pltpu.sync_copy(x_hbm.at[b, pl.ds(row0, rows_need), :, :], xbuf)

    def load_rows(kh):
        return xbuf[_row_ds(kh, th, stride), :, :]

    _tile_compute(load_rows, w1_ref, b1_ref, w2_ref, b2_ref, w3_ref, b3_ref, o_ref)


def pack_nin_params(params):
    """One-time weight repack (hoisted out of the jitted forward, per review)."""
    w1, b1, w2, b2, w3, b3 = params
    cout, cin, k, _ = w1.shape
    # MXU N/K granule: 128 suffices when Cout <= 128 (v5e native, and no extra work on
    # v6e/v7x); use 256 when Cout > 128 to keep the 256x256 MXUs of v6e/v7x fully fed.
    granule = 128 if cout <= 128 else 256
    cpad = _round_up(cout, granule)
    pc = cpad - cout
    # conv1 OIHW -> [kh, kw*Cin + c, o]  (matches the (kw, Cin) interleave of the input)
    w1m = jnp.transpose(w1, (2, 3, 1, 0)).reshape(k, k * cin, cout)
    w1m = jnp.pad(w1m, ((0, 0), (0, 0), (0, pc))).astype(jnp.bfloat16)
    w2m = jnp.pad(w2.reshape(cout, cout).T, ((0, pc), (0, pc))).astype(jnp.bfloat16)
    w3m = jnp.pad(w3.reshape(cout, cout).T, ((0, pc), (0, pc))).astype(jnp.bfloat16)
    b1m = jnp.pad(b1, (0, pc)).reshape(1, cpad).astype(jnp.float32)
    b2m = jnp.pad(b2, (0, pc)).reshape(1, cpad).astype(jnp.float32)
    b3m = jnp.pad(b3, (0, pc)).reshape(1, cpad).astype(jnp.float32)
    return (w1m, b1m, w2m, b2m, w3m, b3m), int(cout)


@functools.partial(jax.jit, static_argnames=("k", "stride", "padding", "cout",
                                             "target_m", "force_tiled"))
def nin_block_forward(x_nchw, packed, *, k, stride, padding, cout,
                      target_m=256, force_tiled=False):
    """Forward pass of nin_block. x: [B, Cin, H, W] (NCHW, like PyTorch)."""
    w1m, b1m, w2m, b2m, w3m, b3m = packed
    B, Cin, H, W = x_nchw.shape
    kk, kcin, Cpad = w1m.shape
    assert kk == k and kcin == k * Cin

    Ho = (H + 2 * padding - k) // stride + 1
    Wo = (W + 2 * padding - k) // stride + 1

    # Output-row tile: ~target_m output pixels; keep th*Wo a multiple of 8 sublanes.
    th = max(1, min(Ho, max(1, target_m // max(1, Wo))))
    while th > 1 and (th * Wo) % 8 != 0:
        th -= 1
    n_rb = pl.cdiv(Ho, th)
    Ho_pad = n_rb * th

    # Zero-padded NHWC image (extra bottom rows cover the Ho -> Ho_pad roundup).
    Hp_pad = max(H + 2 * padding, (Ho_pad - 1) * stride + k)
    x_nhwc = jnp.transpose(x_nchw, (0, 2, 3, 1)).astype(jnp.bfloat16)
    xpad = jnp.pad(x_nhwc, ((0, 0),
                            (padding, Hp_pad - H - padding),
                            (padding, padding),
                            (0, 0)))

    # Lane-dense (kw, Cin) interleave: xw[b, h, j, kw*Cin + c] = xpad[b, h, j*s + kw, c].
    # Folds the kw taps (and the W-stride) into the matmul contraction dim.
    taps = [xpad[:, :, kw: kw + (Wo - 1) * stride + 1: stride, :] for kw in range(k)]
    xw = jnp.stack(taps, axis=3).reshape(B, Hp_pad, Wo, kcin)
    # TODO(synk): for large Cin (k*Cin >= 128) a per-tap K=Cin variant avoids this k-fold blowup.

    # Generation-aware VMEM cap (~75% of physical: ~96 MiB v5e/v6e, ~48 MiB v7x).
    try:
        vmem_cap = int(pltpu.get_tpu_info().vmem_capacity_bytes)
        if vmem_cap < 16 * 2**20:
            vmem_cap = 64 * 2**20
    except Exception:
        vmem_cap = 64 * 2**20
    vmem_limit = max(32 * 2**20, int(0.75 * vmem_cap))

    # Layout-padded (tiled) VMEM footprint estimate.
    x_res = _padded_bytes((Hp_pad, Wo, kcin), jnp.bfloat16)
    w_tot = (_padded_bytes((k, kcin, Cpad), jnp.bfloat16)
             + 2 * _padded_bytes((Cpad, Cpad), jnp.bfloat16)
             + 3 * _padded_bytes((1, Cpad), jnp.float32))
    o_tile = _padded_bytes((th, Wo, Cpad), jnp.bfloat16)
    live = 6 * th * Wo * Cpad * 4            # f32 accumulator + intermediates headroom
    est_resident = 2 * x_res + 2 * w_tot + 2 * o_tile + live

    use_resident = ((not force_tiled)
                    and 2 * x_res <= vmem_limit // 3
                    and est_resident <= vmem_limit // 2)

    weight_specs = [
        pl.BlockSpec((k, kcin, Cpad), lambda b, r: (0, 0, 0)),
        pl.BlockSpec((1, Cpad), lambda b, r: (0, 0)),
        pl.BlockSpec((Cpad, Cpad), lambda b, r: (0, 0)),
        pl.BlockSpec((1, Cpad), lambda b, r: (0, 0)),
        pl.BlockSpec((Cpad, Cpad), lambda b, r: (0, 0)),
        pl.BlockSpec((1, Cpad), lambda b, r: (0, 0)),
    ]
    out_spec = pl.BlockSpec((None, th, Wo, Cpad), lambda b, r: (b, r, 0, 0))

    if use_resident:
        kern = functools.partial(_nin_kernel_resident, stride=stride)
        # Packed image: block index constant along the row-block axis, so it is
        # DMA'd once per batch and stays resident in VMEM.
        in_specs = [pl.BlockSpec((None, Hp_pad, Wo, kcin), lambda b, r: (b, 0, 0, 0))]
        scratch = ()
    else:
        kern = functools.partial(_nin_kernel_tiled, stride=stride)
        in_specs = [pl.BlockSpec(memory_space=pl.ANY)]      # raw HBM; halo DMA in-kernel
        rows_need = (th - 1) * stride + k
        scratch = (pltpu.VMEM((rows_need, Wo, kcin), jnp.bfloat16),)

    out = pl.pallas_call(
        kern,
        out_shape=jax.ShapeDtypeStruct((B, Ho_pad, Wo, Cpad), jnp.bfloat16),
        grid_spec=pltpu.PrefetchScalarGridSpec(
            num_scalar_prefetch=0,
            grid=(B, n_rb),
            in_specs=in_specs + weight_specs,
            out_specs=out_spec,
            scratch_shapes=scratch),
        compiler_params=pltpu.CompilerParams(
            dimension_semantics=("parallel", "parallel"),
            vmem_limit_bytes=vmem_limit),
    )(xw, w1m, b1m, w2m, b2m, w3m, b3m)

    # Drop row/channel padding; back to NCHW only for parity with the PyTorch module
    # (NHWC-consuming callers can skip this slice+transpose).
    y = out[:, :Ho, :, :cout].astype(x_nchw.dtype)
    return jnp.transpose(y, (0, 3, 1, 2))


def init_nin_params(key, in_channels, out_channels, k):
    """Deterministic PyTorch-style (uniform +-1/sqrt(fan_in)) init."""
    keys = jax.random.split(key, 6)

    def u(kk, shape, fan_in):
        bound = 1.0 / jnp.sqrt(fan_in)
        return jax.random.uniform(kk, shape, jnp.float32, -bound, bound)

    fan1 = in_channels * k * k
    fan2 = out_channels * 1 * 1
    w1 = u(keys[0], (out_channels, in_channels, k, k), fan1)
    b1 = u(keys[1], (out_channels,), fan1)
    w2 = u(keys[2], (out_channels, out_channels, 1, 1), fan2)
    b2 = u(keys[3], (out_channels,), fan2)
    w3 = u(keys[4], (out_channels, out_channels, 1, 1), fan2)
    b3 = u(keys[5], (out_channels,), fan2)
    return (w1, b1, w2, b2, w3, b3)


def _reference(x, params, k, stride, padding):
    """Plain-JAX f32 reference of the nin_block forward (for verification)."""
    w1, b1, w2, b2, w3, b3 = params

    def conv(x, w, b, s, p):
        y = jax.lax.conv_general_dilated(
            x, w, window_strides=(s, s), padding=[(p, p), (p, p)],
            dimension_numbers=("NCHW", "OIHW", "NCHW"))
        return jax.nn.relu(y + b[None, :, None, None])

    h = conv(x, w1, b1, stride, padding)
    h = conv(h, w2, b2, 1, 0)
    h = conv(h, w3, b3, 1, 0)
    return h


if __name__ == "__main__":
    # Small shapes consistent with the module: nin_block(4, 32, 3, 1, 1)
    B, Cin, H, W = 2, 4, 16, 16
    Cout, K, STRIDE, PAD = 32, 3, 1, 1

    key = jax.random.PRNGKey(0)
    kx, kp = jax.random.split(key)
    x = jax.random.normal(kx, (B, Cin, H, W), dtype=jnp.float32)
    params = init_nin_params(kp, Cin, Cout, K)
    packed, cout = pack_nin_params(params)

    y_ref = _reference(x, params, K, STRIDE, PAD)

    # Primary path: per-batch VMEM-resident packed image.
    y = nin_block_forward(x, packed, k=K, stride=STRIDE, padding=PAD, cout=cout)
    y = jax.block_until_ready(y)
    assert y.shape == (B, Cout, H, W), y.shape
    # bf16 MXU operands / bf16 output with f32 accumulation -> loosened tolerance.
    assert jnp.allclose(y, y_ref, rtol=5e-2, atol=1.5e-1), (
        "resident path mismatch vs reference, max abs err = "
        f"{float(jnp.max(jnp.abs(y - y_ref)))}")

    # Fallback path (halo row-block tiles + in-kernel DMA), used when the padded image
    # slab would not fit ~1/3 of VMEM (v7x / large images). Exercised here for coverage.
    y_t = nin_block_forward(x, packed, k=K, stride=STRIDE, padding=PAD, cout=cout,
                            force_tiled=True)
    y_t = jax.block_until_ready(y_t)
    assert jnp.allclose(y_t, y_ref, rtol=5e-2, atol=1.5e-1), (
        "tiled path mismatch vs reference, max abs err = "
        f"{float(jnp.max(jnp.abs(y_t - y_ref)))}")

    print("KERNEL_OK")
</pallas_src>

<mosaic_0001>
module attributes {stable_mosaic.version = 11 : i64} {
  func.func @_nin_kernel_resident(%arg0: i32, %arg1: i32, %arg2: memref<1x18x16x12xbf16, #tpu.memory_space<vmem>>, %arg3: memref<3x12x128xbf16, #tpu.memory_space<vmem>>, %arg4: memref<1x128xf32, #tpu.memory_space<vmem>>, %arg5: memref<128x128xbf16, #tpu.memory_space<vmem>>, %arg6: memref<1x128xf32, #tpu.memory_space<vmem>>, %arg7: memref<128x128xbf16, #tpu.memory_space<vmem>>, %arg8: memref<1x128xf32, #tpu.memory_space<vmem>>, %arg9: memref<1x16x16x128xbf16, #tpu.memory_space<vmem>>) attributes {dimension_semantics = [#tpu.dimension_semantics<parallel>, #tpu.dimension_semantics<parallel>], iteration_bounds = array<i64: 2, 1>, scalar_prefetch = 0 : i64, scratch_operands = 0 : i64, tpu.core_type = #tpu.core_type<tc>, window_params = [{transform_indices = @transform_0, window_bounds = array<i64: 1, 18, 16, 12>}, {pipeline_mode = #tpu.pipeline_mode<synchronous>, transform_indices = @transform_1, window_bounds = array<i64: 3, 12, 128>}, {pipeline_mode = #tpu.pipeline_mode<synchronous>, transform_indices = @transform_2, window_bounds = array<i64: 1, 128>}, {pipeline_mode = #tpu.pipeline_mode<synchronous>, transform_indices = @transform_3, window_bounds = array<i64: 128, 128>}, {pipeline_mode = #tpu.pipeline_mode<synchronous>, transform_indices = @transform_4, window_bounds = array<i64: 1, 128>}, {pipeline_mode = #tpu.pipeline_mode<synchronous>, transform_indices = @transform_5, window_bounds = array<i64: 128, 128>}, {pipeline_mode = #tpu.pipeline_mode<synchronous>, transform_indices = @transform_6, window_bounds = array<i64: 1, 128>}, {transform_indices = @transform_7, window_bounds = array<i64: 1, 16, 16, 128>}]} {
    %c16_i32 = arith.constant 16 : i32
    %0 = arith.muli %arg1, %c16_i32 : i32
    %1 = tpu.assume_multiple %0, 16 : i32
    %cst = arith.constant 0.000000e+00 : f32
    %2 = vector.broadcast %cst : f32 to vector<256x128xf32>
    %c0_i32 = arith.constant 0 : i32
    %3 = arith.addi %1, %c0_i32 : i32
    %c0 = arith.constant 0 : index
    %4 = arith.index_cast %3 : i32 to index
    %c0_0 = arith.constant 0 : index
    %c0_1 = arith.constant 0 : index
    %5 = vector.load %arg2[%c0, %4, %c0_0, %c0_1] : memref<1x18x16x12xbf16, #tpu.memory_space<vmem>>, vector<1x16x16x12xbf16>
    %6 = vector.shape_cast %5 : vector<1x16x16x12xbf16> to vector<16x16x12xbf16>
    %7 = vector.shape_cast %6 : vector<16x16x12xbf16> to vector<256x12xbf16>
    %c0_2 = arith.constant 0 : index
    %c0_3 = arith.constant 0 : index
    %c0_4 = arith.constant 0 : index
    %8 = vector.load %arg3[%c0_2, %c0_3, %c0_4] : memref<3x12x128xbf16, #tpu.memory_space<vmem>>, vector<1x12x128xbf16>
    %9 = vector.shape_cast %8 : vector<1x12x128xbf16> to vector<12x128xbf16>
    %cst_5 = arith.constant dense<0.000000e+00> : vector<256x128xf32>
    %10 = tpu.matmul %7, %9, %cst_5 {dimension_numbers = #tpu.dot_dimension_numbers<[1], [0], [0], [1], [0, 0, 1, 1], [], []>} : vector<256x12xbf16>, vector<12x128xbf16>, vector<256x128xf32> -> vector<256x128xf32>
    %11 = arith.addf %2, %10 : vector<256x128xf32>
    %c1_i32 = arith.constant 1 : i32
    %12 = arith.addi %1, %c1_i32 : i32
    %c0_6 = arith.constant 0 : index
    %13 = arith.index_cast %12 : i32 to index
    %c0_7 = arith.constant 0 : index
    %c0_8 = arith.constant 0 : index
    %14 = vector.load %arg2[%c0_6, %13, %c0_7, %c0_8] : memref<1x18x16x12xbf16, #tpu.memory_space<vmem>>, vector<1x16x16x12xbf16>
    %15 = vector.shape_cast %14 : vector<1x16x16x12xbf16> to vector<16x16x12xbf16>
    %16 = vector.shape_cast %15 : vector<16x16x12xbf16> to vector<256x12xbf16>
    %c1 = arith.constant 1 : index
    %c0_9 = arith.constant 0 : index
    %c0_10 = arith.constant 0 : index
    %17 = vector.load %arg3[%c1, %c0_9, %c0_10] : memref<3x12x128xbf16, #tpu.memory_space<vmem>>, vector<1x12x128xbf16>
    %18 = vector.shape_cast %17 : vector<1x12x128xbf16> to vector<12x128xbf16>
    %cst_11 = arith.constant dense<0.000000e+00> : vector<256x128xf32>
    %19 = tpu.matmul %16, %18, %cst_11 {dimension_numbers = #tpu.dot_dimension_numbers<[1], [0], [0], [1], [0, 0, 1, 1], [], []>} : vector<256x12xbf16>, vector<12x128xbf16>, vector<256x128xf32> -> vector<256x128xf32>
    %20 = arith.addf %11, %19 : vector<256x128xf32>
    %c2_i32 = arith.constant 2 : i32
    %21 = arith.addi %1, %c2_i32 : i32
    %c0_12 = arith.constant 0 : index
    %22 = arith.index_cast %21 : i32 to index
    %c0_13 = arith.constant 0 : index
    %c0_14 = arith.constant 0 : index
    %23 = vector.load %arg2[%c0_12, %22, %c0_13, %c0_14] : memref<1x18x16x12xbf16, #tpu.memory_space<vmem>>, vector<1x16x16x12xbf16>
    %24 = vector.shape_cast %23 : vector<1x16x16x12xbf16> to vector<16x16x12xbf16>
    %25 = vector.shape_cast %24 : vector<16x16x12xbf16> to vector<256x12xbf16>
    %c2 = arith.constant 2 : index
    %c0_15 = arith.constant 0 : index
    %c0_16 = arith.constant 0 : index
    %26 = vector.load %arg3[%c2, %c0_15, %c0_16] : memref<3x12x128xbf16, #tpu.memory_space<vmem>>, vector<1x12x128xbf16>
    %27 = vector.shape_cast %26 : vector<1x12x128xbf16> to vector<12x128xbf16>
    %cst_17 = arith.constant dense<0.000000e+00> : vector<256x128xf32>
    %28 = tpu.matmul %25, %27, %cst_17 {dimension_numbers = #tpu.dot_dimension_numbers<[1], [0], [0], [1], [0, 0, 1, 1], [], []>} : vector<256x12xbf16>, vector<12x128xbf16>, vector<256x128xf32> -> vector<256x128xf32>
    %29 = arith.addf %20, %28 : vector<256x128xf32>
    %c0_18 = arith.constant 0 : index
    %c0_19 = arith.constant 0 : index
    %30 = vector.load %arg4[%c0_18, %c0_19] : memref<1x128xf32, #tpu.memory_space<vmem>>, vector<1x128xf32>
    %31 = vector.broadcast %30 : vector<1x128xf32> to vector<256x128xf32>
    %32 = arith.addf %29, %31 : vector<256x128xf32>
    %cst_20 = arith.constant 0.000000e+00 : f32
    %33 = vector.broadcast %cst_20 : f32 to vector<256x128xf32>
    %34 = arith.maximumf %32, %33 : vector<256x128xf32>
    %35 = arith.truncf %34 : vector<256x128xf32> to vector<256x128xbf16>
    %c0_21 = arith.constant 0 : index
    %c0_22 = arith.constant 0 : index
    %36 = vector.load %arg5[%c0_21, %c0_22] : memref<128x128xbf16, #tpu.memory_space<vmem>>, vector<128x128xbf16>
    %cst_23 = arith.constant dense<0.000000e+00> : vector<256x128xf32>
    %37 = tpu.matmul %35, %36, %cst_23 {dimension_numbers = #tpu.dot_dimension_numbers<[1], [0], [0], [1], [0, 0, 1, 1], [], []>} : vector<256x128xbf16>, vector<128x128xbf16>, vector<256x128xf32> -> vector<256x128xf32>
    %c0_24 = arith.constant 0 : index
    %c0_25 = arith.constant 0 : index
    %38 = vector.load %arg6[%c0_24, %c0_25] : memref<1x128xf32, #tpu.memory_space<vmem>>, vector<1x128xf32>
    %39 = vector.broadcast %38 : vector<1x128xf32> to vector<256x128xf32>
    %40 = arith.addf %37, %39 : vector<256x128xf32>
    %cst_26 = arith.constant 0.000000e+00 : f32
    %41 = vector.broadcast %cst_26 : f32 to vector<256x128xf32>
    %42 = arith.maximumf %40, %41 : vector<256x128xf32>
    %43 = arith.truncf %42 : vector<256x128xf32> to vector<256x128xbf16>
    %c0_27 = arith.constant 0 : index
    %c0_28 = arith.constant 0 : index
    %44 = vector.load %arg7[%c0_27, %c0_28] : memref<128x128xbf16, #tpu.memory_space<vmem>>, vector<128x128xbf16>
    %cst_29 = arith.constant dense<0.000000e+00> : vector<256x128xf32>
    %45 = tpu.matmul %43, %44, %cst_29 {dimension_numbers = #tpu.dot_dimension_numbers<[1], [0], [0], [1], [0, 0, 1, 1], [], []>} : vector<256x128xbf16>, vector<128x128xbf16>, vector<256x128xf32> -> vector<256x128xf32>
    %c0_30 = arith.constant 0 : index
    %c0_31 = arith.constant 0 : index
    %46 = vector.load %arg8[%c0_30, %c0_31] : memref<1x128xf32, #tpu.memory_space<vmem>>, vector<1x128xf32>
    %47 = vector.broadcast %46 : vector<1x128xf32> to vector<256x128xf32>
    %48 = arith.addf %45, %47 : vector<256x128xf32>
    %cst_32 = arith.constant 0.000000e+00 : f32
    %49 = vector.broadcast %cst_32 : f32 to vector<256x128xf32>
    %50 = arith.maximumf %48, %49 : vector<256x128xf32>
    %51 = vector.shape_cast %50 : vector<256x128xf32> to vector<16x16x128xf32>
    %52 = arith.truncf %51 : vector<16x16x128xf32> to vector<16x16x128xbf16>
    %c0_33 = arith.constant 0 : index
    %c0_34 = arith.constant 0 : index
    %c0_35 = arith.constant 0 : index
    %c0_36 = arith.constant 0 : index
    %53 = vector.load %arg9[%c0_33, %c0_34, %c0_35, %c0_36] : memref<1x16x16x128xbf16, #tpu.memory_space<vmem>>, vector<1x16x16x128xbf16>
    %54 = vector.shape_cast %53 : vector<1x16x16x128xbf16> to vector<16x16x128xbf16>
    %55 = vector.shape_cast %52 : vector<16x16x128xbf16> to vector<1x16x16x128xbf16>
    tpu.vector_store %arg9[%c0_33, %c0_34, %c0_35, %c0_36], %55 {strides = array<i32>} : memref<1x16x16x128xbf16, #tpu.memory_space<vmem>>, vector<1x16x16x128xbf16>,
    return
  }
  func.func @transform_0(%arg0: i32, %arg1: i32) -> (i32, i32, i32, i32) {
    %c0_i32 = arith.constant 0 : i32
    %c0_i32_0 = arith.constant 0 : i32
    %c0_i32_1 = arith.constant 0 : i32
    %c0_i32_2 = arith.constant 0 : i32
    return %arg0, %c0_i32, %c0_i32_0, %c0_i32_1 : i32, i32, i32, i32
  }
  func.func @transform_1(%arg0: i32, %arg1: i32) -> (i32, i32, i32) {
    %c0_i32 = arith.constant 0 : i32
    %c0_i32_0 = arith.constant 0 : i32
    %c0_i32_1 = arith.constant 0 : i32
    %c0_i32_2 = arith.constant 0 : i32
    return %c0_i32, %c0_i32_0, %c0_i32_1 : i32, i32, i32
  }
  func.func @transform_2(%arg0: i32, %arg1: i32) -> (i32, i32) {
    %c0_i32 = arith.constant 0 : i32
    %c0_i32_0 = arith.constant 0 : i32
    %c0_i32_1 = arith.constant 0 : i32
    return %c0_i32, %c0_i32_0 : i32, i32
  }
  func.func @transform_3(%arg0: i32, %arg1: i32) -> (i32, i32) {
    %c0_i32 = arith.constant 0 : i32
    %c0_i32_0 = arith.constant 0 : i32
    %c0_i32_1 = arith.constant 0 : i32
    return %c0_i32, %c0_i32_0 : i32, i32
  }
  func.func @transform_4(%arg0: i32, %arg1: i32) -> (i32, i32) {
    %c0_i32 = arith.constant 0 : i32
    %c0_i32_0 = arith.constant 0 : i32
    %c0_i32_1 = arith.constant 0 : i32
    return %c0_i32, %c0_i32_0 : i32, i32
  }
  func.func @transform_5(%arg0: i32, %arg1: i32) -> (i32, i32) {
    %c0_i32 = arith.constant 0 : i32
    %c0_i32_0 = arith.constant 0 : i32
    %c0_i32_1 = arith.constant 0 : i32
    return %c0_i32, %c0_i32_0 : i32, i32
  }
  func.func @transform_6(%arg0: i32, %arg1: i32) -> (i32, i32) {
    %c0_i32 = arith.constant 0 : i32
    %c0_i32_0 = arith.constant 0 : i32
    %c0_i32_1 = arith.constant 0 : i32
    return %c0_i32, %c0_i32_0 : i32, i32
  }
  func.func @transform_7(%arg0: i32, %arg1: i32) -> (i32, i32, i32, i32) {
    %c0_i32 = arith.constant 0 : i32
    %c0_i32_0 = arith.constant 0 : i32
    %c0_i32_1 = arith.constant 0 : i32
    return %arg0, %arg1, %c0_i32, %c0_i32_0 : i32, i32, i32, i32
  }
}

</mosaic_0001>

<llo_original>
// kernel: nin_block_forward.1
$region0: #{nin_block_forward.1}
  #allocation0 [shape = 'u32[]', space=smem, size = 0x4, offset = 0x4, fixed_abs, tag = 'smem constant byte address 0x4 - core index']
  #allocation1 [shape = 'u32[144,128]{1,0:T(1,128)}', space=vmem, size = 0x12000, scoped, tag = 'internal scratch']
  %s0 = inlined_call_operand.vmem [shape: bf16[2,18,16,12], index: 0, kind: input, shape index: {}]
  %s1 = inlined_call_operand.vmem [shape: bf16[3,12,128], index: 1, kind: input, shape index: {}]
  %s2 = inlined_call_operand.vmem [shape: f32[1,128], index: 2, kind: input, shape index: {}]
  %s3 = inlined_call_operand.vmem [shape: bf16[128,128], index: 3, kind: input, shape index: {}]
  %s4 = inlined_call_operand.vmem [shape: f32[1,128], index: 4, kind: input, shape index: {}]
  %s5 = inlined_call_operand.vmem [shape: bf16[128,128], index: 5, kind: input, shape index: {}]
  %s6 = inlined_call_operand.vmem [shape: f32[1,128], index: 6, kind: input, shape index: {}]
  %s7 = inlined_call_operand.vmem [shape: bf16[2,16,16,128], index: 7, kind: output, shape index: {}]
  %s8 = sld [smem:[#allocation0]]
  $region61: #{nin_block_forward.1} parent=0
    _
  %s10 = ssub.s32 1, %s8
  %s11 = scalar_select 0, %s10, %s8
  loop: start=0, step=1, limit=4
  $region2: #{nin_block_forward.1} parent=0 // loop_pre_header
    _
  $region3: #{nin_block_forward.1} parent=0 // loop_header
    %s13 = sphi 0, %s17
    %p14 = scmp.ge.s32.totalorder %s13, 4
    %s20 = sphi 0, %s32
    %s21 = sphi 0, %s28
    %s22 = sphi 0, %s20
    %s23 = sphi 0, %s21
    %s24 = sphi 0, %s22
    %s25 = sphi 0, %s23
    %s35 = sphi 0, %s37
    %s38 = sphi 0, %s35
    %s39 = sphi 0, %s38
    %s55 = sphi 0, %s39
    %s59 = sphi 0, %s59
    %s61 = sphi 0, %s59
    %s62 = sphi 0, %s61
    %s76 = sphi 0, %s62
    %s80 = sphi 0, %s80
    %s82 = sphi 0, %s80
    %s83 = sphi 0, %s82
    %s97 = sphi 0, %s83
    %s101 = sphi 0, %s101
    %s103 = sphi 0, %s101
    %s104 = sphi 0, %s103
    %s118 = sphi 0, %s104
    %s122 = sphi 0, %s122
    %s124 = sphi 0, %s122
    %s125 = sphi 0, %s124
    %s139 = sphi 0, %s125
    %s143 = sphi 0, %s143
    %s145 = sphi 0, %s143
    %s146 = sphi 0, %s145
    %s160 = sphi 0, %s146
    %s164 = sphi 0, %s164
    %s166 = sphi 0, %s164
    %s167 = sphi 0, %s166
    %s181 = sphi 0, %s167
    %s189 = sphi 0, %s191
    %s192 = sphi 0, %s189
    %s193 = sphi 0, %s192
    %s209 = sphi 0, %s193
  $region4: #{nin_block_forward.1} parent=0 // loop_header_branch
    %16 = sbr.rel (%p14) target = $region8
  $region5: #{nin_block_forward.1} parent=0 // loop_body
    %s18 = ssub.s32 %s13, 1
    %s19 = ssub.s32 %s13, 2
    %s26 = sadd.s32 1, %s21
    %p27 = scmp.ge.s32.totalorder %s26, 1
    %s28 = scalar_select %p27, 0, %s26
    %s29 = sadd.s32 1, %s20
    %s30 = scalar_select %p27, %s29, %s20
    %p31 = scmp.ge.s32.totalorder %s30, 2
    %s32 = scalar_select %p31, 0, %s30
    %s33 = ssub.s32 %s20, %s32
    %p34 = scmp.eq.s32.totalorder %s33, 0
    %s36 = sadd.s32 %s35, 1
    %s37 = scalar_select %p34, %s35, %s36
    %p40 = pneg %p34
    %p41 = scmp.eq.s32.totalorder %s13, 1
    %p42 = por %p40, %p41
    %p43 = scmp.ne.s32.totalorder %s35, %s38
    %p44 = scmp.eq.s32.totalorder %s13, 0
    %p45 = por %p43, %p44
    %p46 = scmp.ne.s32.totalorder %s35, %s38
    %p47 = scmp.eq.s32.totalorder %s18, 1
    %p48 = por %p46, %p47
    %p49 = scmp.ne.s32.totalorder %s38, %s39
    %p50 = scmp.eq.s32.totalorder %s18, 0
    %p51 = por %p49, %p50
    %p52 = scmp.ne.s32.totalorder %s38, %s39
    %p53 = scmp.eq.s32.totalorder %s19, 1
    %p54 = por %p52, %p53
    %p56 = scmp.ne.s32.totalorder %s39, %s55
    %p57 = scmp.eq.s32.totalorder %s19, 0
    %p58 = por %p56, %p57
    %s60 = sadd.s32 %s59, 1
    %p63 = scmp.eq.s32.totalorder %s13, 1
    %p64 = scmp.ne.s32.totalorder %s59, %s61
    %p65 = scmp.eq.s32.totalorder %s13, 0
    %p66 = por %p64, %p65
    %p67 = scmp.ne.s32.totalorder %s59, %s61
    %p68 = scmp.eq.s32.totalorder %s18, 1
    %p69 = por %p67, %p68
    %p70 = scmp.ne.s32.totalorder %s61, %s62
    %p71 = scmp.eq.s32.totalorder %s18, 0
    %p72 = por %p70, %p71
    %p73 = scmp.ne.s32.totalorder %s61, %s62
    %p74 = scmp.eq.s32.totalorder %s19, 1
    %p75 = por %p73, %p74
    %p77 = scmp.ne.s32.totalorder %s62, %s76
    %p78 = scmp.eq.s32.totalorder %s19, 0
    %p79 = por %p77, %p78
    %s81 = sadd.s32 %s80, 1
    %p84 = scmp.eq.s32.totalorder %s13, 1
    %p85 = scmp.ne.s32.totalorder %s80, %s82
    %p86 = scmp.eq.s32.totalorder %s13, 0
    %p87 = por %p85, %p86
    %p88 = scmp.ne.s32.totalorder %s80, %s82
    %p89 = scmp.eq.s32.totalorder %s18, 1
    %p90 = por %p88, %p89
    %p91 = scmp.ne.s32.totalorder %s82, %s83
    %p92 = scmp.eq.s32.totalorder %s18, 0
    %p93 = por %p91, %p92
    %p94 = scmp.ne.s32.totalorder %s82, %s83
    %p95 = scmp.eq.s32.totalorder %s19, 1
    %p96 = por %p94, %p95
    %p98 = scmp.ne.s32.totalorder %s83, %s97
    %p99 = scmp.eq.s32.totalorder %s19, 0
    %p100 = por %p98, %p99
    %s102 = sadd.s32 %s101, 1
    %p105 = scmp.eq.s32.totalorder %s13, 1
    %p106 = scmp.ne.s32.totalorder %s101, %s103
    %p107 = scmp.eq.s32.totalorder %s13, 0
    %p108 = por %p106, %p107
    %p109 = scmp.ne.s32.totalorder %s101, %s103
    %p110 = scmp.eq.s32.totalorder %s18, 1
    %p111 = por %p109, %p110
    %p112 = scmp.ne.s32.totalorder %s103, %s104
    %p113 = scmp.eq.s32.totalorder %s18, 0
    %p114 = por %p112, %p113
    %p115 = scmp.ne.s32.totalorder %s103, %s104
    %p116 = scmp.eq.s32.totalorder %s19, 1
    %p117 = por %p115, %p116
    %p119 = scmp.ne.s32.totalorder %s104, %s118
    %p120 = scmp.eq.s32.totalorder %s19, 0
    %p121 = por %p119, %p120
    %s123 = sadd.s32 %s122, 1
    %p126 = scmp.eq.s32.totalorder %s13, 1
    %p127 = scmp.ne.s32.totalorder %s122, %s124
    %p128 = scmp.eq.s32.totalorder %s13, 0
    %p129 = por %p127, %p128
    %p130 = scmp.ne.s32.totalorder %s122, %s124
    %p131 = scmp.eq.s32.totalorder %s18, 1
    %p132 = por %p130, %p131
    %p133 = scmp.ne.s32.totalorder %s124, %s125
    %p134 = scmp.eq.s32.totalorder %s18, 0
    %p135 = por %p133, %p134
    %p136 = scmp.ne.s32.totalorder %s124, %s125
    %p137 = scmp.eq.s32.totalorder %s19, 1
    %p138 = por %p136, %p137
    %p140 = scmp.ne.s32.totalorder %s125, %s139
    %p141 = scmp.eq.s32.totalorder %s19, 0
    %p142 = por %p140, %p141
    %s144 = sadd.s32 %s143, 1
    %p147 = scmp.eq.s32.totalorder %s13, 1
    %p148 = scmp.ne.s32.totalorder %s143, %s145
    %p149 = scmp.eq.s32.totalorder %s13, 0
    %p150 = por %p148, %p149
    %p151 = scmp.ne.s32.totalorder %s143, %s145
    %p152 = scmp.eq.s32.totalorder %s18, 1
    %p153 = por %p151, %p152
    %p154 = scmp.ne.s32.totalorder %s145, %s146
    %p155 = scmp.eq.s32.totalorder %s18, 0
    %p156 = por %p154, %p155
    %p157 = scmp.ne.s32.totalorder %s145, %s146
    %p158 = scmp.eq.s32.totalorder %s19, 1
    %p159 = por %p157, %p158
    %p161 = scmp.ne.s32.totalorder %s146, %s160
    %p162 = scmp.eq.s32.totalorder %s19, 0
    %p163 = por %p161, %p162
    %s165 = sadd.s32 %s164, 1
    %p168 = scmp.eq.s32.totalorder %s13, 1
    %p169 = scmp.ne.s32.totalorder %s164, %s166
    %p170 = scmp.eq.s32.totalorder %s13, 0
    %p171 = por %p169, %p170
    %p172 = scmp.ne.s32.totalorder %s164, %s166
    %p173 = scmp.eq.s32.totalorder %s18, 1
    %p174 = por %p172, %p173
    %p175 = scmp.ne.s32.totalorder %s166, %s167
    %p176 = scmp.eq.s32.totalorder %s18, 0
    %p177 = por %p175, %p176
    %p178 = scmp.ne.s32.totalorder %s166, %s167
    %p179 = scmp.eq.s32.totalorder %s19, 1
    %p180 = por %p178, %p179
    %p182 = scmp.ne.s32.totalorder %s167, %s181
    %p183 = scmp.eq.s32.totalorder %s19, 0
    %p184 = por %p182, %p183
    %s185 = ssub.s32 %s20, %s32
    %s186 = ssub.s32 %s21, %s28
    %s187 = sor.u32 %s185, %s186
    %p188 = scmp.eq.s32.totalorder %s187, 0
    %s190 = sadd.s32 %s189, 1
    %s191 = scalar_select %p188, %s189, %s190
    %p194 = pneg %p188
    %p195 = scmp.eq.s32.totalorder %s13, 1
    %p196 = por %p194, %p195
    %p197 = scmp.ne.s32.totalorder %s189, %s192
    %p198 = scmp.eq.s32.totalorder %s13, 0
    %p199 = por %p197, %p198
    %p200 = scmp.ne.s32.totalorder %s189, %s192
    %p201 = scmp.eq.s32.totalorder %s18, 1
    %p202 = por %p200, %p201
    %p203 = scmp.ne.s32.totalorder %s192, %s193
    %p204 = scmp.eq.s32.totalorder %s18, 0
    %p205 = por %p203, %p204
    %p206 = scmp.ne.s32.totalorder %s192, %s193
    %p207 = scmp.eq.s32.totalorder %s19, 1
    %p208 = por %p206, %p207
    %p210 = scmp.ne.s32.totalorder %s193, %s209
    %p211 = scmp.eq.s32.totalorder %s19, 0
    %p212 = por %p210, %p211
    %p213 = scmp.le.s32.totalorder 1, %s13
    %p214 = scmp.lt.s32.totalorder %s13, 3
    %p215 = pnand %p213, %p214
    %p216 = pneg %p215
    // Predicated region
    $region9: #{nin_block_forward.1} parent=5 // pred_check
      _
    $region10: #{nin_block_forward.1} parent=5 // pred_check_branch
      %218 = sbr.rel (%p215) target = $region12
    $region11: #{nin_block_forward.1} parent=5 // pred_region
      %s219 = ssub.s32 %s13, 1
      // Predicated region
      $region13: #{nin_block_forward.1} parent=11 // pred_check
        %p220 = pneg %p72
      $region14: #{nin_block_forward.1} parent=11 // pred_check_branch
        %222 = sbr.rel (%p220) target = $region16
      $region15: #{nin_block_forward.1} parent=11 // pred_region
        _
      $region16: #{nin_block_forward.1} parent=11 // pred_fallthru
        _
      // Predicated region
      $region17: #{nin_block_forward.1} parent=11 // pred_check
        %p223 = pneg %p93
      $region18: #{nin_block_forward.1} parent=11 // pred_check_branch
        %225 = sbr.rel (%p223) target = $region20
      $region19: #{nin_block_forward.1} parent=11 // pred_region
        _
      $region20: #{nin_block_forward.1} parent=11 // pred_fallthru
        _
      // Predicated region
      $region21: #{nin_block_forward.1} parent=11 // pred_check
        %p226 = pneg %p114
      $region22: #{nin_block_forward.1} parent=11 // pred_check_branch
        %228 = sbr.rel (%p226) target = $region24
      $region23: #{nin_block_forward.1} parent=11 // pred_region
        _
      $region24: #{nin_block_forward.1} parent=11 // pred_fallthru
        _
      // Predicated region
      $region25: #{nin_block_forward.1} parent=11 // pred_check
        %p229 = pneg %p135
      $region26: #{nin_block_forward.1} parent=11 // pred_check_branch
        %231 = sbr.rel (%p229) target = $region28
      $region27: #{nin_block_forward.1} parent=11 // pred_region
        _
      $region28: #{nin_block_forward.1} parent=11 // pred_fallthru
        _
      // Predicated region
      $region29: #{nin_block_forward.1} parent=11 // pred_check
        %p232 = pneg %p156
      $region30: #{nin_block_forward.1} parent=11 // pred_check_branch
        %234 = sbr.rel (%p232) target = $region32
      $region31: #{nin_block_forward.1} parent=11 // pred_region
        _
      $region32: #{nin_block_forward.1} parent=11 // pred_fallthru
        _
      // Predicated region
      $region33: #{nin_block_forward.1} parent=11 // pred_check
        %p235 = pneg %p177
      $region34: #{nin_block_forward.1} parent=11 // pred_check_branch
        %237 = sbr.rel (%p235) target = $region36
      $region35: #{nin_block_forward.1} parent=11 // pred_region
        _
      $region36: #{nin_block_forward.1} parent=11 // pred_fallthru
        _
    $region12: #{nin_block_forward.1} parent=5 // pred_fallthru
      _
    %p238 = scmp.lt.s32.totalorder %s13, 2
    // Predicated region
    $region37: #{nin_block_forward.1} parent=5 // pred_check
      %p239 = pneg %p238
    $region38: #{nin_block_forward.1} parent=5 // pred_check_branch
      %241 = sbr.rel (%p239) target = $region40
    $region39: #{nin_block_forward.1} parent=5 // pred_region
      // Predicated region
      $region41: #{nin_block_forward.1} parent=39 // pred_check
        %p242 = pneg %p45
      $region42: #{nin_block_forward.1} parent=39 // pred_check_branch
        %244 = sbr.rel (%p242) target = $region44
      $region43: #{nin_block_forward.1} parent=39 // pred_region
        %p245 = scmp.lt.s32.totalorder %s20, 1
        %s246 = scalar_select %p245, %s20, 1
        %s247 = smul.addr %s246, 36
        %s248 = smul.addr %s247, 4
        %s249 = scalar_lea.vmem %s0, %s248
      $region44: #{nin_block_forward.1} parent=39 // pred_fallthru
        _
    $region40: #{nin_block_forward.1} parent=5 // pred_fallthru
      _
    %p250 = scmp.le.s32.totalorder 1, %s13
    %p251 = scmp.lt.s32.totalorder %s13, 3
    %p252 = pnand %p250, %p251
    %p253 = pneg %p252
    // Predicated region
    $region45: #{nin_block_forward.1} parent=5 // pred_check
      _
    $region46: #{nin_block_forward.1} parent=5 // pred_check_branch
      %255 = sbr.rel (%p252) target = $region48
    $region47: #{nin_block_forward.1} parent=5 // pred_region
      %s256 = ssub.s32 %s13, 1
      %p257 = scmp.lt.s32.totalorder %s22, 1
      %s258 = scalar_select %p257, %s22, 1
      %s259 = smul.addr %s258, 36
      %s260 = smul.addr %s259, 4
      %s261 = scalar_lea.vmem %s0, %s260
      %p262 = pneg %p51
      %p263 = pneg %p48
      %p264 = pneg %p72
      %p265 = pneg %p69
      %p266 = pneg %p93
      %p267 = pneg %p90
      %p268 = pneg %p114
      %p269 = pneg %p111
      %p270 = pneg %p135
      %p271 = pneg %p132
      %p272 = pneg %p156
      %p273 = pneg %p153
      %p274 = pneg %p177
      %p275 = pneg %p174
      %p276 = pneg %p205
      %p277 = pneg %p202
      %s278 = smul.u32 16, %s23
      %p279 = scmp.lt.s32.totalorder %s22, 1
      %s280 = scalar_select %p279, %s22, 1
      %p281 = scmp.lt.s32.totalorder %s278, 15
      %s282 = scalar_select %p281, %s278, 15
      %s283 = smul.addr %s282, 2
      %s284 = smul.addr %s280, 32
      %s285 = sadd.s32 %s283, %s284
      %s286 = smul.addr %s285, 4
      %s287 = scalar_lea.vmem %s7, %s286
      %p288 = scmp.lt.s32.totalorder %s22, 1
      %s289 = scalar_select %p288, %s22, 1
      %s290 = smul.addr %s289, 36
      %s291 = smul.addr %s290, 4
      %s292 = scalar_lea.vmem %s0, %s291
      %s293 = smul.u32 16, %s23
      %p294 = scmp.lt.s32.totalorder %s22, 1
      %s295 = scalar_select %p294, %s22, 1
      %p296 = scmp.lt.s32.totalorder %s293, 15
      %s297 = scalar_select %p296, %s293, 15
      %s298 = smul.addr %s297, 2
      %s299 = smul.addr %s295, 32
      %s300 = sadd.s32 %s298, %s299
      %s301 = smul.addr %s300, 4
      %s302 = scalar_lea.vmem %s7, %s301
      %s303 = smul.u32 16, %s23
      %s305 = smul.u32 %s23, 16
      %s306 = smul.u32 %s305, 2
      %s307 = smul.addr %s306, 4
      %s308 = scalar_lea.vmem %s292, %s307
      %v309 = vld [vmem:[%s308] sm:$0xf]
      %v310 = vld [vmem:[%s308 + $0x4] sm:$0xf]
      %v311 = vld [vmem:[%s308 + $0x8] sm:$0xf]
      %v312 = vld [vmem:[%s308 + $0xc] sm:$0xf]
      %v313 = vld [vmem:[%s308 + $0x10] sm:$0xf]
      %v314 = vld [vmem:[%s308 + $0x14] sm:$0xf]
      %v315 = vld [vmem:[%s308 + $0x18] sm:$0xf]
      %v316 = vld [vmem:[%s308 + $0x1c] sm:$0xf]
      %v317 = vld [vmem:[%s308 + $0x20] sm:$0xf]
      %v318 = vld [vmem:[%s308 + $0x24] sm:$0xf]
      %v319 = vld [vmem:[%s308 + $0x28] sm:$0xf]
      %v320 = vld [vmem:[%s308 + $0x2c] sm:$0xf]
      %v321 = vld [vmem:[%s308 + $0x30] sm:$0xf]
      %v322 = vld [vmem:[%s308 + $0x34] sm:$0xf]
      %v323 = vld [vmem:[%s308 + $0x38] sm:$0xf]
      %v324 = vld [vmem:[%s308 + $0x3c] sm:$0xf]
      %v325 = vld [vmem:[%s308 + $0x40] sm:$0xf]
      %v326 = vld [vmem:[%s308 + $0x44] sm:$0xf]
      %v327 = vld [vmem:[%s308 + $0x48] sm:$0xf]
      %v328 = vld [vmem:[%s308 + $0x4c] sm:$0xf]
      %v329 = vld [vmem:[%s308 + $0x50] sm:$0xf]
      %v330 = vld [vmem:[%s308 + $0x54] sm:$0xf]
      %v331 = vld [vmem:[%s308 + $0x58] sm:$0xf]
      %v332 = vld [vmem:[%s308 + $0x5c] sm:$0xf]
      %v333 = vld [vmem:[%s308 + $0x60] sm:$0xf]
      %v334 = vld [vmem:[%s308 + $0x64] sm:$0xf]
      %v335 = vld [vmem:[%s308 + $0x68] sm:$0xf]
      %v336 = vld [vmem:[%s308 + $0x6c] sm:$0xf]
      %v337 = vld [vmem:[%s308 + $0x70] sm:$0xf]
      %v338 = vld [vmem:[%s308 + $0x74] sm:$0xf]
      %v339 = vld [vmem:[%s308 + $0x78] sm:$0xf]
      %v340 = vld [vmem:[%s308 + $0x7c] sm:$0xf]
      %v341 = vld [vmem:[%s1] sm:$0xf]
      %v342 = vld [vmem:[%s1 + $0x4] sm:$0x3]
      %s343 = sadd.s32 %s305, 1
      %s344 = smul.u32 %s343, 2
      %s345 = smul.addr %s344, 4
      %s346 = scalar_lea.vmem %s292, %s345
      %v347 = vld [vmem:[%s346] sm:$0xf]
      %v348 = vld [vmem:[%s346 + $0x4] sm:$0xf]
      %v349 = vld [vmem:[%s346 + $0x8] sm:$0xf]
      %v350 = vld [vmem:[%s346 + $0xc] sm:$0xf]
      %v351 = vld [vmem:[%s346 + $0x10] sm:$0xf]
      %v352 = vld [vmem:[%s346 + $0x14] sm:$0xf]
      %v353 = vld [vmem:[%s346 + $0x18] sm:$0xf]
      %v354 = vld [vmem:[%s346 + $0x1c] sm:$0xf]
      %v355 = vld [vmem:[%s346 + $0x20] sm:$0xf]
      %v356 = vld [vmem:[%s346 + $0x24] sm:$0xf]
      %v357 = vld [vmem:[%s346 + $0x28] sm:$0xf]
      %v358 = vld [vmem:[%s346 + $0x2c] sm:$0xf]
      %v359 = vld [vmem:[%s346 + $0x30] sm:$0xf]
      %v360 = vld [vmem:[%s346 + $0x34] sm:$0xf]
      %v361 = vld [vmem:[%s346 + $0x38] sm:$0xf]
      %v362 = vld [vmem:[%s346 + $0x3c] sm:$0xf]
      %v363 = vld [vmem:[%s346 + $0x40] sm:$0xf]
      %v364 = vld [vmem:[%s346 + $0x44] sm:$0xf]
      %v365 = vld [vmem:[%s346 + $0x48] sm:$0xf]
      %v366 = vld [vmem:[%s346 + $0x4c] sm:$0xf]
      %v367 = vld [vmem:[%s346 + $0x50] sm:$0xf]
      %v368 = vld [vmem:[%s346 + $0x54] sm:$0xf]
      %v369 = vld [vmem:[%s346 + $0x58] sm:$0xf]
      %v370 = vld [vmem:[%s346 + $0x5c] sm:$0xf]
      %v371 = vld [vmem:[%s346 + $0x60] sm:$0xf]
      %v372 = vld [vmem:[%s346 + $0x64] sm:$0xf]
      %v373 = vld [vmem:[%s346 + $0x68] sm:$0xf]
      %v374 = vld [vmem:[%s346 + $0x6c] sm:$0xf]
      %v375 = vld [vmem:[%s346 + $0x70] sm:$0xf]
      %v376 = vld [vmem:[%s346 + $0x74] sm:$0xf]
      %v377 = vld [vmem:[%s346 + $0x78] sm:$0xf]
      %v378 = vld [vmem:[%s346 + $0x7c] sm:$0xf]
      %s379 = scalar_lea.vmem %s1, 8
      %v380 = vld [vmem:[%s379] sm:$0xf]
      %v381 = vld [vmem:[%s379 + $0x4] sm:$0x3]
      %v414 = vunpack.c.l.b16 %v347
      %v415 = vunpack.c.l.b16 %v348
      %v416 = vunpack.c.l.b16 %v349
      %v417 = vunpack.c.l.b16 %v350
      %v418 = vunpack.c.l.b16 %v351
      %v419 = vunpack.c.l.b16 %v352
      %v420 = vunpack.c.l.b16 %v353
      %v421 = vunpack.c.l.b16 %v354
      %v422 = vunpack.c.l.b16 %v355
      %v423 = vunpack.c.l.b16 %v356
      %v424 = vunpack.c.l.b16 %v357
      %v425 = vunpack.c.l.b16 %v358
      %v426 = vunpack.c.l.b16 %v359
      %v427 = vunpack.c.l.b16 %v360
      %v428 = vunpack.c.l.b16 %v361
      %v429 = vunpack.c.l.b16 %v362
      %v430 = vunpack.c.l.b16 %v363
      %v431 = vunpack.c.l.b16 %v364
      %v432 = vunpack.c.l.b16 %v365
      %v433 = vunpack.c.l.b16 %v366
      %v434 = vunpack.c.l.b16 %v367
      %v435 = vunpack.c.l.b16 %v368
      %v436 = vunpack.c.l.b16 %v369
      %v437 = vunpack.c.l.b16 %v370
      %v438 = vunpack.c.l.b16 %v371
      %v439 = vunpack.c.l.b16 %v372
      %v440 = vunpack.c.l.b16 %v373
      %v441 = vunpack.c.l.b16 %v374
      %v442 = vunpack.c.l.b16 %v375
      %v443 = vunpack.c.l.b16 %v376
      %v444 = vunpack.c.l.b16 %v377
      %v445 = vunpack.c.l.b16 %v378
      %v446 = vpack.c.b16 %v415, %v414
      %v447 = vpack.c.b16 %v417, %v416
      %v448 = vpack.c.b16 %v419, %v418
      %v449 = vpack.c.b16 %v421, %v420
      %v450 = vpack.c.b16 %v423, %v422
      %v451 = vpack.c.b16 %v425, %v424
      %v452 = vpack.c.b16 %v427, %v426
      %v453 = vpack.c.b16 %v429, %v428
      %v454 = vpack.c.b16 %v431, %v430
      %v455 = vpack.c.b16 %v433, %v432
      %v456 = vpack.c.b16 %v435, %v434
      %v457 = vpack.c.b16 %v437, %v436
      %v458 = vpack.c.b16 %v439, %v438
      %v459 = vpack.c.b16 %v441, %v440
      %v460 = vpack.c.b16 %v443, %v442
      %v461 = vpack.c.b16 %v445, %v444
      %v464 = vunpack.c.l.b16 %v380
      %v465 = vunpack.c.l.b16 %v381
      %v466 = vpack.c.b16 %v465, %v464
      %vm467 = vcmask 97280
      %v469 = vsel %vm467, %v446, 0
      %v472 = vsel %vm467, %v447, 0
      %v475 = vsel %vm467, %v448, 0
      %v478 = vsel %vm467, %v449, 0
      %v481 = vsel %vm467, %v450, 0
      %v484 = vsel %vm467, %v451, 0
      %v487 = vsel %vm467, %v452, 0
      %v490 = vsel %vm467, %v453, 0
      %v493 = vsel %vm467, %v454, 0
      %v496 = vsel %vm467, %v455, 0
      %v499 = vsel %vm467, %v456, 0
      %v502 = vsel %vm467, %v457, 0
      %v505 = vsel %vm467, %v458, 0
      %v508 = vsel %vm467, %v459, 0
      %v511 = vsel %vm467, %v460, 0
      %v514 = vsel %vm467, %v461, 0
      %vm516 = vcmask 1045504
      %v518 = vsel %vm516, %v466, 0
      %520 = vmatprep.subr.bf16.mxu0 0
      %521 = vmatpush1.bf16.msra.mxu0 0
      %522 = vmatprep.subr.bf16.mxu0 0
      %523 = vmatpush1.bf16.msra.mxu0 0
      %524 = vmatprep.subr.bf16.mxu0 0
      %525 = vmatpush1.bf16.msra.mxu0 0
      %526 = vmatprep.subr.bf16.mxu0 0
      %527 = vmatpush1.bf16.msra.mxu0 0
      %528 = vmatprep.subr.bf16.mxu0 0
      %529 = vmatpush1.bf16.msra.mxu0 0
      %530 = vmatprep.subr.bf16.mxu0 0
      %531 = vmatpush1.bf16.msra.mxu0 0
      %532 = vmatprep.subr.bf16.mxu0 0
      %533 = vmatpush1.bf16.msra.mxu0 0
      %534 = vmatprep.subr.bf16.mxu0 0
      %535 = vmatpush1.bf16.msra.mxu0 %v518
      %536 = vmatprep.subr.bf16.mxu0 0
      %537 = vmatpush2.bf16.msra.mxu0 0
      %538 = vmatprep.subr.bf16.mxu0 0
      %539 = vmatpush2.bf16.msra.mxu0 0
      %540 = vmatprep.subr.bf16.mxu0 0
      %541 = vmatpush2.bf16.msra.mxu0 0
      %542 = vmatprep.subr.bf16.mxu0 0
      %543 = vmatpush2.bf16.msra.mxu0 0
      %544 = vmatprep.subr.bf16.mxu0 0
      %545 = vmatpush2.bf16.msra.mxu0 0
      %546 = vmatprep.subr.bf16.mxu0 0
      %547 = vmatpush2.bf16.msra.mxu0 0
      %548 = vmatprep.subr.bf16.mxu0 0
      %549 = vmatpush2.bf16.msra.mxu0 0
      %550 = vmatprep.subr.bf16.mxu0 0
      %551 = vmatpush2.bf16.msra.mxu0 0
      %552 = vmatprep.mubr.bf16.mxu0 0
      %553 = vmatmul.mubr.bf16.gmra.mxu0 %v469
      %v554 = vpop.f32.mrf.mxu0
      %v555 = vadd.f32 0.0, %v554
      %v556 = vpop.f32.mrf.mxu0
      %v557 = vpop.f32.mrf.mxu0
      %v558 = vadd.f32 0.0, %v557
      %v559 = vpop.f32.mrf.mxu0
      %560 = vmatprep.mubr.bf16.mxu0 0
      %561 = vmatmul.mubr.bf16.gmra.mxu0 %v472
      %v562 = vpop.f32.mrf.mxu0
      %v563 = vadd.f32 0.0, %v562
      %v564 = vpop.f32.mrf.mxu0
      %v565 = vpop.f32.mrf.mxu0
      %v566 = vadd.f32 0.0, %v565
      %v567 = vpop.f32.mrf.mxu0
      %568 = vmatprep.mubr.bf16.mxu0 0
      %569 = vmatmul.mubr.bf16.gmra.mxu0 %v475
      %v570 = vpop.f32.mrf.mxu0
      %v571 = vadd.f32 0.0, %v570
      %v572 = vpop.f32.mrf.mxu0
      %v573 = vpop.f32.mrf.mxu0
      %v574 = vadd.f32 0.0, %v573
      %v575 = vpop.f32.mrf.mxu0
      %576 = vmatprep.mubr.bf16.mxu0 0
      %577 = vmatmul.mubr.bf16.gmra.mxu0 %v478
      %v578 = vpop.f32.mrf.mxu0
      %v579 = vadd.f32 0.0, %v578
      %v580 = vpop.f32.mrf.mxu0
      %v581 = vpop.f32.mrf.mxu0
      %v582 = vadd.f32 0.0, %v581
      %v583 = vpop.f32.mrf.mxu0
      %584 = vmatprep.mubr.bf16.mxu0 0
      %585 = vmatmul.mubr.bf16.gmra.mxu0 %v481
      %v586 = vpop.f32.mrf.mxu0
      %v587 = vadd.f32 0.0, %v586
      %v588 = vpop.f32.mrf.mxu0
      %v589 = vpop.f32.mrf.mxu0
      %v590 = vadd.f32 0.0, %v589
      %v591 = vpop.f32.mrf.mxu0
      %592 = vmatprep.mubr.bf16.mxu0 0
      %593 = vmatmul.mubr.bf16.gmra.mxu0 %v484
      %v594 = vpop.f32.mrf.mxu0
      %v595 = vadd.f32 0.0, %v594
      %v596 = vpop.f32.mrf.mxu0
      %v597 = vpop.f32.mrf.mxu0
      %v598 = vadd.f32 0.0, %v597
      %v599 = vpop.f32.mrf.mxu0
      %600 = vmatprep.mubr.bf16.mxu0 0
      %601 = vmatmul.mubr.bf16.gmra.mxu0 %v487
      %v602 = vpop.f32.mrf.mxu0
      %v603 = vadd.f32 0.0, %v602
      %v604 = vpop.f32.mrf.mxu0
      %v605 = vpop.f32.mrf.mxu0
      %v606 = vadd.f32 0.0, %v605
      %v607 = vpop.f32.mrf.mxu0
      %608 = vmatprep.mubr.bf16.mxu0 0
      %609 = vmatmul.mubr.bf16.gmra.mxu0 %v490
      %v610 = vpop.f32.mrf.mxu0
      %v611 = vadd.f32 0.0, %v610
      %v612 = vpop.f32.mrf.mxu0
      %v613 = vpop.f32.mrf.mxu0
      %v614 = vadd.f32 0.0, %v613
      %v615 = vpop.f32.mrf.mxu0
      %616 = vmatprep.mubr.bf16.mxu0 0
      %617 = vmatmul.mubr.bf16.gmra.mxu0 %v493
      %v618 = vpop.f32.mrf.mxu0
      %v619 = vadd.f32 0.0, %v618
      %v620 = vpop.f32.mrf.mxu0
      %v621 = vpop.f32.mrf.mxu0
      %v622 = vadd.f32 0.0, %v621
      %v623 = vpop.f32.mrf.mxu0
      %624 = vmatprep.mubr.bf16.mxu0 0
      %625 = vmatmul.mubr.bf16.gmra.mxu0 %v496
      %v626 = vpop.f32.mrf.mxu0
      %v627 = vadd.f32 0.0, %v626
      %v628 = vpop.f32.mrf.mxu0
      %v629 = vpop.f32.mrf.mxu0
      %v630 = vadd.f32 0.0, %v629
      %v631 = vpop.f32.mrf.mxu0
      %632 = vmatprep.mubr.bf16.mxu0 0
      %633 = vmatmul.mubr.bf16.gmra.mxu0 %v499
      %v634 = vpop.f32.mrf.mxu0
      %v635 = vadd.f32 0.0, %v634
      %v636 = vpop.f32.mrf.mxu0
      %v637 = vpop.f32.mrf.mxu0
      %v638 = vadd.f32 0.0, %v637
      %v639 = vpop.f32.mrf.mxu0
      %640 = vmatprep.mubr.bf16.mxu0 0
      %641 = vmatmul.mubr.bf16.gmra.mxu0 %v502
      %v642 = vpop.f32.mrf.mxu0
      %v643 = vadd.f32 0.0, %v642
      %v644 = vpop.f32.mrf.mxu0
      %v645 = vpop.f32.mrf.mxu0
      %v646 = vadd.f32 0.0, %v645
      %v647 = vpop.f32.mrf.mxu0
      %648 = vmatprep.mubr.bf16.mxu0 0
      %649 = vmatmul.mubr.bf16.gmra.mxu0 %v505
      %v650 = vpop.f32.mrf.mxu0
      %v651 = vadd.f32 0.0, %v650
      %v652 = vpop.f32.mrf.mxu0
      %v653 = vpop.f32.mrf.mxu0
      %v654 = vadd.f32 0.0, %v653
      %v655 = vpop.f32.mrf.mxu0
      %656 = vmatprep.mubr.bf16.mxu0 0
      %657 = vmatmul.mubr.bf16.gmra.mxu0 %v508
      %v658 = vpop.f32.mrf.mxu0
      %v659 = vadd.f32 0.0, %v658
      %v660 = vpop.f32.mrf.mxu0
      %v661 = vpop.f32.mrf.mxu0
      %v662 = vadd.f32 0.0, %v661
      %v663 = vpop.f32.mrf.mxu0
      %664 = vmatprep.mubr.bf16.mxu0 0
      %665 = vmatmul.mubr.bf16.gmra.mxu0 %v511
      %v666 = vpop.f32.mrf.mxu0
      %v667 = vadd.f32 0.0, %v666
      %v668 = vpop.f32.mrf.mxu0
      %v669 = vpop.f32.mrf.mxu0
      %v670 = vadd.f32 0.0, %v669
      %v671 = vpop.f32.mrf.mxu0
      %672 = vmatprep.mubr.bf16.mxu0 0
      %673 = vmatmul.mubr.bf16.gmra.mxu0 %v514
      %v674 = vpop.f32.mrf.mxu0
      %v675 = vadd.f32 0.0, %v674
      %v676 = vpop.f32.mrf.mxu0
      %v677 = vpop.f32.mrf.mxu0
      %v678 = vadd.f32 0.0, %v677
      %v679 = vpop.f32.mrf.mxu0
      %680 = vdwg.mxu0
      %v713 = vunpack.c.l.b16 %v309
      %v714 = vunpack.c.l.b16 %v310
      %v715 = vunpack.c.l.b16 %v311
      %v716 = vunpack.c.l.b16 %v312
      %v717 = vunpack.c.l.b16 %v313
      %v718 = vunpack.c.l.b16 %v314
      %v719 = vunpack.c.l.b16 %v315
      %v720 = vunpack.c.l.b16 %v316
      %v721 = vunpack.c.l.b16 %v317
      %v722 = vunpack.c.l.b16 %v318
      %v723 = vunpack.c.l.b16 %v319
      %v724 = vunpack.c.l.b16 %v320
      %v725 = vunpack.c.l.b16 %v321
      %v726 = vunpack.c.l.b16 %v322
      %v727 = vunpack.c.l.b16 %v323
      %v728 = vunpack.c.l.b16 %v324
      %v729 = vunpack.c.l.b16 %v325
      %v730 = vunpack.c.l.b16 %v326
      %v731 = vunpack.c.l.b16 %v327
      %v732 = vunpack.c.l.b16 %v328
      %v733 = vunpack.c.l.b16 %v329
      %v734 = vunpack.c.l.b16 %v330
      %v735 = vunpack.c.l.b16 %v331
      %v736 = vunpack.c.l.b16 %v332
      %v737 = vunpack.c.l.b16 %v333
      %v738 = vunpack.c.l.b16 %v334
      %v739 = vunpack.c.l.b16 %v335
      %v740 = vunpack.c.l.b16 %v336
      %v741 = vunpack.c.l.b16 %v337
      %v742 = vunpack.c.l.b16 %v338
      %v743 = vunpack.c.l.b16 %v339
      %v744 = vunpack.c.l.b16 %v340
      %v745 = vpack.c.b16 %v714, %v713
      %v746 = vpack.c.b16 %v716, %v715
      %v747 = vpack.c.b16 %v718, %v717
      %v748 = vpack.c.b16 %v720, %v719
      %v749 = vpack.c.b16 %v722, %v721
      %v750 = vpack.c.b16 %v724, %v723
      %v751 = vpack.c.b16 %v726, %v725
      %v752 = vpack.c.b16 %v728, %v727
      %v753 = vpack.c.b16 %v730, %v729
      %v754 = vpack.c.b16 %v732, %v731
      %v755 = vpack.c.b16 %v734, %v733
      %v756 = vpack.c.b16 %v736, %v735
      %v757 = vpack.c.b16 %v738, %v737
      %v758 = vpack.c.b16 %v740, %v739
      %v759 = vpack.c.b16 %v742, %v741
      %v760 = vpack.c.b16 %v744, %v743
      %v763 = vunpack.c.l.b16 %v341
      %v764 = vunpack.c.l.b16 %v342
      %v765 = vpack.c.b16 %v764, %v763
      %v767 = vsel %vm467, %v745, 0
      %v770 = vsel %vm467, %v746, 0
      %v773 = vsel %vm467, %v747, 0
      %v776 = vsel %vm467, %v748, 0
      %v779 = vsel %vm467, %v749, 0
      %v782 = vsel %vm467, %v750, 0
      %v785 = vsel %vm467, %v751, 0
      %v788 = vsel %vm467, %v752, 0
      %v791 = vsel %vm467, %v753, 0
      %v794 = vsel %vm467, %v754, 0
      %v797 = vsel %vm467, %v755, 0
      %v800 = vsel %vm467, %v756, 0
      %v803 = vsel %vm467, %v757, 0
      %v806 = vsel %vm467, %v758, 0
      %v809 = vsel %vm467, %v759, 0
      %v812 = vsel %vm467, %v760, 0
      %v815 = vsel %vm516, %v765, 0
      %817 = vmatprep.subr.bf16.mxu0 0
      %818 = vmatpush1.bf16.msra.mxu0 0
      %819 = vmatprep.subr.bf16.mxu0 0
      %820 = vmatpush1.bf16.msra.mxu0 0
      %821 = vmatprep.subr.bf16.mxu0 0
      %822 = vmatpush1.bf16.msra.mxu0 0
      %823 = vmatprep.subr.bf16.mxu0 0
      %824 = vmatpush1.bf16.msra.mxu0 0
      %825 = vmatprep.subr.bf16.mxu0 0
      %826 = vmatpush1.bf16.msra.mxu0 0
      %827 = vmatprep.subr.bf16.mxu0 0
      %828 = vmatpush1.bf16.msra.mxu0 0
      %829 = vmatprep.subr.bf16.mxu0 0
      %830 = vmatpush1.bf16.msra.mxu0 0
      %831 = vmatprep.subr.bf16.mxu0 0
      %832 = vmatpush1.bf16.msra.mxu0 %v815
      %833 = vmatprep.subr.bf16.mxu0 0
      %834 = vmatpush2.bf16.msra.mxu0 0
      %835 = vmatprep.subr.bf16.mxu0 0
      %836 = vmatpush2.bf16.msra.mxu0 0
      %837 = vmatprep.subr.bf16.mxu0 0
      %838 = vmatpush2.bf16.msra.mxu0 0
      %839 = vmatprep.subr.bf16.mxu0 0
      %840 = vmatpush2.bf16.msra.mxu0 0
      %841 = vmatprep.subr.bf16.mxu0 0
      %842 = vmatpush2.bf16.msra.mxu0 0
      %843 = vmatprep.subr.bf16.mxu0 0
      %844 = vmatpush2.bf16.msra.mxu0 0
      %845 = vmatprep.subr.bf16.mxu0 0
      %846 = vmatpush2.bf16.msra.mxu0 0
      %847 = vmatprep.subr.bf16.mxu0 0
      %848 = vmatpush2.bf16.msra.mxu0 0
      %849 = vmatprep.mubr.bf16.mxu0 0
      %850 = vmatmul.mubr.bf16.gmra.mxu0 %v767
      %v851 = vpop.f32.mrf.mxu0
      %v852 = vadd.f32 %v555, %v851
      %v853 = vpop.f32.mrf.mxu0
      %v854 = vpop.f32.mrf.mxu0
      %v855 = vadd.f32 %v558, %v854
      %v856 = vpop.f32.mrf.mxu0
      %857 = vmatprep.mubr.bf16.mxu0 0
      %858 = vmatmul.mubr.bf16.gmra.mxu0 %v770
      %v859 = vpop.f32.mrf.mxu0
      %v860 = vadd.f32 %v563, %v859
      %v861 = vpop.f32.mrf.mxu0
      %v862 = vpop.f32.mrf.mxu0
      %v863 = vadd.f32 %v566, %v862
      %v864 = vpop.f32.mrf.mxu0
      %865 = vmatprep.mubr.bf16.mxu0 0
      %866 = vmatmul.mubr.bf16.gmra.mxu0 %v773
      %v867 = vpop.f32.mrf.mxu0
      %v868 = vadd.f32 %v571, %v867
      %v869 = vpop.f32.mrf.mxu0
      %v870 = vpop.f32.mrf.mxu0
      %v871 = vadd.f32 %v574, %v870
      %v872 = vpop.f32.mrf.mxu0
      %873 = vmatprep.mubr.bf16.mxu0 0
      %874 = vmatmul.mubr.bf16.gmra.mxu0 %v776
      %v875 = vpop.f32.mrf.mxu0
      %v876 = vadd.f32 %v579, %v875
      %v877 = vpop.f32.mrf.mxu0
      %v878 = vpop.f32.mrf.mxu0
      %v879 = vadd.f32 %v582, %v878
      %v880 = vpop.f32.mrf.mxu0
      %881 = vmatprep.mubr.bf16.mxu0 0
      %882 = vmatmul.mubr.bf16.gmra.mxu0 %v779
      %v883 = vpop.f32.mrf.mxu0
      %v884 = vadd.f32 %v587, %v883
      %v885 = vpop.f32.mrf.mxu0
      %v886 = vpop.f32.mrf.mxu0
      %v887 = vadd.f32 %v590, %v886
      %v888 = vpop.f32.mrf.mxu0
      %889 = vmatprep.mubr.bf16.mxu0 0
      %890 = vmatmul.mubr.bf16.gmra.mxu0 %v782
      %v891 = vpop.f32.mrf.mxu0
      %v892 = vadd.f32 %v595, %v891
      %v893 = vpop.f32.mrf.mxu0
      %v894 = vpop.f32.mrf.mxu0
      %v895 = vadd.f32 %v598, %v894
      %v896 = vpop.f32.mrf.mxu0
      %897 = vmatprep.mubr.bf16.mxu0 0
      %898 = vmatmul.mubr.bf16.gmra.mxu0 %v785
      %v899 = vpop.f32.mrf.mxu0
      %v900 = vadd.f32 %v603, %v899
      %v901 = vpop.f32.mrf.mxu0
      %v902 = vpop.f32.mrf.mxu0
      %v903 = vadd.f32 %v606, %v902
      %v904 = vpop.f32.mrf.mxu0
      %905 = vmatprep.mubr.bf16.mxu0 0
      %906 = vmatmul.mubr.bf16.gmra.mxu0 %v788
      %v907 = vpop.f32.mrf.mxu0
      %v908 = vadd.f32 %v611, %v907
      %v909 = vpop.f32.mrf.mxu0
      %v910 = vpop.f32.mrf.mxu0
      %v911 = vadd.f32 %v614, %v910
      %v912 = vpop.f32.mrf.mxu0
      %913 = vmatprep.mubr.bf16.mxu0 0
      %914 = vmatmul.mubr.bf16.gmra.mxu0 %v791
      %v915 = vpop.f32.mrf.mxu0
      %v916 = vadd.f32 %v619, %v915
      %v917 = vpop.f32.mrf.mxu0
      %v918 = vpop.f32.mrf.mxu0
      %v919 = vadd.f32 %v622, %v918
      %v920 = vpop.f32.mrf.mxu0
      %921 = vmatprep.mubr.bf16.mxu0 0
      %922 = vmatmul.mubr.bf16.gmra.mxu0 %v794
      %v923 = vpop.f32.mrf.mxu0
      %v924 = vadd.f32 %v627, %v923
      %v925 = vpop.f32.mrf.mxu0
      %v926 = vpop.f32.mrf.mxu0
      %v927 = vadd.f32 %v630, %v926
      %v928 = vpop.f32.mrf.mxu0
      %929 = vmatprep.mubr.bf16.mxu0 0
      %930 = vmatmul.mubr.bf16.gmra.mxu0 %v797
      %v931 = vpop.f32.mrf.mxu0
      %v932 = vadd.f32 %v635, %v931
      %v933 = vpop.f32.mrf.mxu0
      %v934 = vpop.f32.mrf.mxu0
      %v935 = vadd.f32 %v638, %v934
      %v936 = vpop.f32.mrf.mxu0
      %937 = vmatprep.mubr.bf16.mxu0 0
      %938 = vmatmul.mubr.bf16.gmra.mxu0 %v800
      %v939 = vpop.f32.mrf.mxu0
      %v940 = vadd.f32 %v643, %v939
      %v941 = vpop.f32.mrf.mxu0
      %v942 = vpop.f32.mrf.mxu0
      %v943 = vadd.f32 %v646, %v942
      %v944 = vpop.f32.mrf.mxu0
      %945 = vmatprep.mubr.bf16.mxu0 0
      %946 = vmatmul.mubr.bf16.gmra.mxu0 %v803
      %v947 = vpop.f32.mrf.mxu0
      %v948 = vadd.f32 %v651, %v947
      %v949 = vpop.f32.mrf.mxu0
      %v950 = vpop.f32.mrf.mxu0
      %v951 = vadd.f32 %v654, %v950
      %v952 = vpop.f32.mrf.mxu0
      %953 = vmatprep.mubr.bf16.mxu0 0
      %954 = vmatmul.mubr.bf16.gmra.mxu0 %v806
      %v955 = vpop.f32.mrf.mxu0
      %v956 = vadd.f32 %v659, %v955
      %v957 = vpop.f32.mrf.mxu0
      %v958 = vpop.f32.mrf.mxu0
      %v959 = vadd.f32 %v662, %v958
      %v960 = vpop.f32.mrf.mxu0
      %961 = vmatprep.mubr.bf16.mxu0 0
      %962 = vmatmul.mubr.bf16.gmra.mxu0 %v809
      %v963 = vpop.f32.mrf.mxu0
      %v964 = vadd.f32 %v667, %v963
      %v965 = vpop.f32.mrf.mxu0
      %v966 = vpop.f32.mrf.mxu0
      %v967 = vadd.f32 %v670, %v966
      %v968 = vpop.f32.mrf.mxu0
      %969 = vmatprep.mubr.bf16.mxu0 0
      %970 = vmatmul.mubr.bf16.gmra.mxu0 %v812
      %v971 = vpop.f32.mrf.mxu0
      %v972 = vadd.f32 %v675, %v971
      %v973 = vpop.f32.mrf.mxu0
      %v974 = vpop.f32.mrf.mxu0
      %v975 = vadd.f32 %v678, %v974
      %v976 = vpop.f32.mrf.mxu0
      %977 = vdwg.mxu0
      %s978 = sadd.s32 %s305, 2
      %s979 = smul.u32 %s978, 2
      %s980 = smul.addr %s979, 4
      %s981 = scalar_lea.vmem %s292, %s980
      %v982 = vld [vmem:[%s981] sm:$0xf]
      %v983 = vld [vmem:[%s981 + $0x4] sm:$0xf]
      %v984 = vld [vmem:[%s981 + $0x8] sm:$0xf]
      %v985 = vld [vmem:[%s981 + $0xc] sm:$0xf]
      %v986 = vld [vmem:[%s981 + $0x10] sm:$0xf]
      %v987 = vld [vmem:[%s981 + $0x14] sm:$0xf]
      %v988 = vld [vmem:[%s981 + $0x18] sm:$0xf]
      %v989 = vld [vmem:[%s981 + $0x1c] sm:$0xf]
      %v990 = vld [vmem:[%s981 + $0x20] sm:$0xf]
      %v991 = vld [vmem:[%s981 + $0x24] sm:$0xf]
      %v992 = vld [vmem:[%s981 + $0x28] sm:$0xf]
      %v993 = vld [vmem:[%s981 + $0x2c] sm:$0xf]
      %v994 = vld [vmem:[%s981 + $0x30] sm:$0xf]
      %v995 = vld [vmem:[%s981 + $0x34] sm:$0xf]
      %v996 = vld [vmem:[%s981 + $0x38] sm:$0xf]
      %v997 = vld [vmem:[%s981 + $0x3c] sm:$0xf]
      %v998 = vld [vmem:[%s981 + $0x40] sm:$0xf]
      %v999 = vld [vmem:[%s981 + $0x44] sm:$0xf]
      %v1000 = vld [vmem:[%s981 + $0x48] sm:$0xf]
      %v1001 = vld [vmem:[%s981 + $0x4c] sm:$0xf]
      %v1002 = vld [vmem:[%s981 + $0x50] sm:$0xf]
      %v1003 = vld [vmem:[%s981 + $0x54] sm:$0xf]
      %v1004 = vld [vmem:[%s981 + $0x58] sm:$0xf]
      %v1005 = vld [vmem:[%s981 + $0x5c] sm:$0xf]
      %v1006 = vld [vmem:[%s981 + $0x60] sm:$0xf]
      %v1007 = vld [vmem:[%s981 + $0x64] sm:$0xf]
      %v1008 = vld [vmem:[%s981 + $0x68] sm:$0xf]
      %v1009 = vld [vmem:[%s981 + $0x6c] sm:$0xf]
      %v1010 = vld [vmem:[%s981 + $0x70] sm:$0xf]
      %v1011 = vld [vmem:[%s981 + $0x74] sm:$0xf]
      %v1012 = vld [vmem:[%s981 + $0x78] sm:$0xf]
      %v1013 = vld [vmem:[%s981 + $0x7c] sm:$0xf]
      %s1014 = scalar_lea.vmem %s1, 16
      %v1015 = vld [vmem:[%s1014] sm:$0xf]
      %v1016 = vld [vmem:[%s1014 + $0x4] sm:$0x3]
      %v1049 = vunpack.c.l.b16 %v982
      %v1050 = vunpack.c.l.b16 %v983
      %v1051 = vunpack.c.l.b16 %v984
      %v1052 = vunpack.c.l.b16 %v985
      %v1053 = vunpack.c.l.b16 %v986
      %v1054 = vunpack.c.l.b16 %v987
      %v1055 = vunpack.c.l.b16 %v988
      %v1056 = vunpack.c.l.b16 %v989
      %v1057 = vunpack.c.l.b16 %v990
      %v1058 = vunpack.c.l.b16 %v991
      %v1059 = vunpack.c.l.b16 %v992
      %v1060 = vunpack.c.l.b16 %v993
      %v1061 = vunpack.c.l.b16 %v994
      %v1062 = vunpack.c.l.b16 %v995
      %v1063 = vunpack.c.l.b16 %v996
      %v1064 = vunpack.c.l.b16 %v997
      %v1065 = vunpack.c.l.b16 %v998
      %v1066 = vunpack.c.l.b16 %v999
      %v1067 = vunpack.c.l.b16 %v1000
      %v1068 = vunpack.c.l.b16 %v1001
      %v1069 = vunpack.c.l.b16 %v1002
      %v1070 = vunpack.c.l.b16 %v1003
      %v1071 = vunpack.c.l.b16 %v1004
      %v1072 = vunpack.c.l.b16 %v1005
      %v1073 = vunpack.c.l.b16 %v1006
      %v1074 = vunpack.c.l.b16 %v1007
      %v1075 = vunpack.c.l.b16 %v1008
      %v1076 = vunpack.c.l.b16 %v1009
      %v1077 = vunpack.c.l.b16 %v1010
      %v1078 = vunpack.c.l.b16 %v1011
      %v1079 = vunpack.c.l.b16 %v1012
      %v1080 = vunpack.c.l.b16 %v1013
      %v1081 = vpack.c.b16 %v1050, %v1049
      %v1082 = vpack.c.b16 %v1052, %v1051
      %v1083 = vpack.c.b16 %v1054, %v1053
      %v1084 = vpack.c.b16 %v1056, %v1055
      %v1085 = vpack.c.b16 %v1058, %v1057
      %v1086 = vpack.c.b16 %v1060, %v1059
      %v1087 = vpack.c.b16 %v1062, %v1061
      %v1088 = vpack.c.b16 %v1064, %v1063
      %v1089 = vpack.c.b16 %v1066, %v1065
      %v1090 = vpack.c.b16 %v1068, %v1067
      %v1091 = vpack.c.b16 %v1070, %v1069
      %v1092 = vpack.c.b16 %v1072, %v1071
      %v1093 = vpack.c.b16 %v1074, %v1073
      %v1094 = vpack.c.b16 %v1076, %v1075
      %v1095 = vpack.c.b16 %v1078, %v1077
      %v1096 = vpack.c.b16 %v1080, %v1079
      %v1099 = vunpack.c.l.b16 %v1015
      %v1100 = vunpack.c.l.b16 %v1016
      %v1101 = vpack.c.b16 %v1100, %v1099
      %v1103 = vsel %vm467, %v1081, 0
      %v1106 = vsel %vm467, %v1082, 0
      %v1109 = vsel %vm467, %v1083, 0
      %v1112 = vsel %vm467, %v1084, 0
      %v1115 = vsel %vm467, %v1085, 0
      %v1118 = vsel %vm467, %v1086, 0
      %v1121 = vsel %vm467, %v1087, 0
      %v1124 = vsel %vm467, %v1088, 0
      %v1127 = vsel %vm467, %v1089, 0
      %v1130 = vsel %vm467, %v1090, 0
      %v1133 = vsel %vm467, %v1091, 0
      %v1136 = vsel %vm467, %v1092, 0
      %v1139 = vsel %vm467, %v1093, 0
      %v1142 = vsel %vm467, %v1094, 0
      %v1145 = vsel %vm467, %v1095, 0
      %v1148 = vsel %vm467, %v1096, 0
      %v1151 = vsel %vm516, %v1101, 0
      %1153 = vmatprep.subr.bf16.mxu0 0
      %1154 = vmatpush1.bf16.msra.mxu0 0
      %1155 = vmatprep.subr.bf16.mxu0 0
      %1156 = vmatpush1.bf16.msra.mxu0 0
      %1157 = vmatprep.subr.bf16.mxu0 0
      %1158 = vmatpush1.bf16.msra.mxu0 0
      %1159 = vmatprep.subr.bf16.mxu0 0
      %1160 = vmatpush1.bf16.msra.mxu0 0
      %1161 = vmatprep.subr.bf16.mxu0 0
      %1162 = vmatpush1.bf16.msra.mxu0 0
      %1163 = vmatprep.subr.bf16.mxu0 0
      %1164 = vmatpush1.bf16.msra.mxu0 0
      %1165 = vmatprep.subr.bf16.mxu0 0
      %1166 = vmatpush1.bf16.msra.mxu0 0
      %1167 = vmatprep.subr.bf16.mxu0 0
      %1168 = vmatpush1.bf16.msra.mxu0 %v1151
      %1169 = vmatprep.subr.bf16.mxu0 0
      %1170 = vmatpush2.bf16.msra.mxu0 0
      %1171 = vmatprep.subr.bf16.mxu0 0
      %1172 = vmatpush2.bf16.msra.mxu0 0
      %1173 = vmatprep.subr.bf16.mxu0 0
      %1174 = vmatpush2.bf16.msra.mxu0 0
      %1175 = vmatprep.subr.bf16.mxu0 0
      %1176 = vmatpush2.bf16.msra.mxu0 0
      %1177 = vmatprep.subr.bf16.mxu0 0
      %1178 = vmatpush2.bf16.msra.mxu0 0
      %1179 = vmatprep.subr.bf16.mxu0 0
      %1180 = vmatpush2.bf16.msra.mxu0 0
      %1181 = vmatprep.subr.bf16.mxu0 0
      %1182 = vmatpush2.bf16.msra.mxu0 0
      %1183 = vmatprep.subr.bf16.mxu0 0
      %1184 = vmatpush2.bf16.msra.mxu0 0
      %1185 = vmatprep.mubr.bf16.mxu0 0
      %1186 = vmatmul.mubr.bf16.gmra.mxu0 %v1103
      %v1187 = vpop.f32.mrf.mxu0
      %v1188 = vadd.f32 0.0, %v1187
      %v1189 = vpop.f32.mrf.mxu0
      %v1190 = vpop.f32.mrf.mxu0
      %v1191 = vadd.f32 0.0, %v1190
      %v1192 = vpop.f32.mrf.mxu0
      %1193 = vmatprep.mubr.bf16.mxu0 0
      %1194 = vmatmul.mubr.bf16.gmra.mxu0 %v1106
      %v1195 = vpop.f32.mrf.mxu0
      %v1196 = vadd.f32 0.0, %v1195
      %v1197 = vpop.f32.mrf.mxu0
      %v1198 = vpop.f32.mrf.mxu0
      %v1199 = vadd.f32 0.0, %v1198
      %v1200 = vpop.f32.mrf.mxu0
      %1201 = vmatprep.mubr.bf16.mxu0 0
      %1202 = vmatmul.mubr.bf16.gmra.mxu0 %v1109
      %v1203 = vpop.f32.mrf.mxu0
      %v1204 = vadd.f32 0.0, %v1203
      %v1205 = vpop.f32.mrf.mxu0
      %v1206 = vpop.f32.mrf.mxu0
      %v1207 = vadd.f32 0.0, %v1206
      %v1208 = vpop.f32.mrf.mxu0
      %1209 = vmatprep.mubr.bf16.mxu0 0
      %1210 = vmatmul.mubr.bf16.gmra.mxu0 %v1112
      %v1211 = vpop.f32.mrf.mxu0
      %v1212 = vadd.f32 0.0, %v1211
      %v1213 = vpop.f32.mrf.mxu0
      %v1214 = vpop.f32.mrf.mxu0
      %v1215 = vadd.f32 0.0, %v1214
      %v1216 = vpop.f32.mrf.mxu0
      %1217 = vmatprep.mubr.bf16.mxu0 0
      %1218 = vmatmul.mubr.bf16.gmra.mxu0 %v1115
      %v1219 = vpop.f32.mrf.mxu0
      %v1220 = vadd.f32 0.0, %v1219
      %v1221 = vpop.f32.mrf.mxu0
      %v1222 = vpop.f32.mrf.mxu0
      %v1223 = vadd.f32 0.0, %v1222
      %v1224 = vpop.f32.mrf.mxu0
      %1225 = vmatprep.mubr.bf16.mxu0 0
      %1226 = vmatmul.mubr.bf16.gmra.mxu0 %v1118
      %v1227 = vpop.f32.mrf.mxu0
      %v1228 = vadd.f32 0.0, %v1227
      %v1229 = vpop.f32.mrf.mxu0
      %v1230 = vpop.f32.mrf.mxu0
      %v1231 = vadd.f32 0.0, %v1230
      %v1232 = vpop.f32.mrf.mxu0
      %1233 = vmatprep.mubr.bf16.mxu0 0
      %1234 = vmatmul.mubr.bf16.gmra.mxu0 %v1121
      %v1235 = vpop.f32.mrf.mxu0
      %v1236 = vadd.f32 0.0, %v1235
      %v1237 = vpop.f32.mrf.mxu0
      %v1238 = vpop.f32.mrf.mxu0
      %v1239 = vadd.f32 0.0, %v1238
      %v1240 = vpop.f32.mrf.mxu0
      %1241 = vmatprep.mubr.bf16.mxu0 0
      %1242 = vmatmul.mubr.bf16.gmra.mxu0 %v1124
      %v1243 = vpop.f32.mrf.mxu0
      %v1244 = vadd.f32 0.0, %v1243
      %v1245 = vpop.f32.mrf.mxu0
      %v1246 = vpop.f32.mrf.mxu0
      %v1247 = vadd.f32 0.0, %v1246
      %v1248 = vpop.f32.mrf.mxu0
      %1249 = vmatprep.mubr.bf16.mxu0 0
      %1250 = vmatmul.mubr.bf16.gmra.mxu0 %v1127
      %v1251 = vpop.f32.mrf.mxu0
      %v1252 = vadd.f32 0.0, %v1251
      %v1253 = vpop.f32.mrf.mxu0
      %v1254 = vpop.f32.mrf.mxu0
      %v1255 = vadd.f32 0.0, %v1254
      %v1256 = vpop.f32.mrf.mxu0
      %1257 = vmatprep.mubr.bf16.mxu0 0
      %1258 = vmatmul.mubr.bf16.gmra.mxu0 %v1130
      %v1259 = vpop.f32.mrf.mxu0
      %v1260 = vadd.f32 0.0, %v1259
      %v1261 = vpop.f32.mrf.mxu0
      %v1262 = vpop.f32.mrf.mxu0
      %v1263 = vadd.f32 0.0, %v1262
      %v1264 = vpop.f32.mrf.mxu0
      %1265 = vmatprep.mubr.bf16.mxu0 0
      %1266 = vmatmul.mubr.bf16.gmra.mxu0 %v1133
      %v1267 = vpop.f32.mrf.mxu0
      %v1268 = vadd.f32 0.0, %v1267
      %v1269 = vpop.f32.mrf.mxu0
      %v1270 = vpop.f32.mrf.mxu0
      %v1271 = vadd.f32 0.0, %v1270
      %v1272 = vpop.f32.mrf.mxu0
      %1273 = vmatprep.mubr.bf16.mxu0 0
      %1274 = vmatmul.mubr.bf16.gmra.mxu0 %v1136
      %v1275 = vpop.f32.mrf.mxu0
      %v1276 = vadd.f32 0.0, %v1275
      %v1277 = vpop.f32.mrf.mxu0
      %v1278 = vpop.f32.mrf.mxu0
      %v1279 = vadd.f32 0.0, %v1278
      %v1280 = vpop.f32.mrf.mxu0
      %1281 = vmatprep.mubr.bf16.mxu0 0
      %1282 = vmatmul.mubr.bf16.gmra.mxu0 %v1139
      %v1283 = vpop.f32.mrf.mxu0
      %v1284 = vadd.f32 0.0, %v1283
      %v1285 = vpop.f32.mrf.mxu0
      %v1286 = vpop.f32.mrf.mxu0
      %v1287 = vadd.f32 0.0, %v1286
      %v1288 = vpop.f32.mrf.mxu0
      %1289 = vmatprep.mubr.bf16.mxu0 0
      %1290 = vmatmul.mubr.bf16.gmra.mxu0 %v1142
      %v1291 = vpop.f32.mrf.mxu0
      %v1292 = vadd.f32 0.0, %v1291
      %v1293 = vpop.f32.mrf.mxu0
      %v1294 = vpop.f32.mrf.mxu0
      %v1295 = vadd.f32 0.0, %v1294
      %v1296 = vpop.f32.mrf.mxu0
      %1297 = vmatprep.mubr.bf16.mxu0 0
      %1298 = vmatmul.mubr.bf16.gmra.mxu0 %v1145
      %v1299 = vpop.f32.mrf.mxu0
      %v1300 = vadd.f32 0.0, %v1299
      %v1301 = vpop.f32.mrf.mxu0
      %v1302 = vpop.f32.mrf.mxu0
      %v1303 = vadd.f32 0.0, %v1302
      %v1304 = vpop.f32.mrf.mxu0
      %1305 = vmatprep.mubr.bf16.mxu0 0
      %1306 = vmatmul.mubr.bf16.gmra.mxu0 %v1148
      %v1307 = vpop.f32.mrf.mxu0
      %v1308 = vadd.f32 0.0, %v1307
      %v1309 = vpop.f32.mrf.mxu0
      %v1310 = vpop.f32.mrf.mxu0
      %v1311 = vadd.f32 0.0, %v1310
      %v1312 = vpop.f32.mrf.mxu0
      %1313 = vdwg.mxu0
      %v1314 = vadd.f32 %v852, %v1188
      %v1315 = vadd.f32 %v855, %v1191
      %v1316 = vadd.f32 %v860, %v1196
      %v1317 = vadd.f32 %v863, %v1199
      %v1318 = vadd.f32 %v868, %v1204
      %v1319 = vadd.f32 %v871, %v1207
      %v1320 = vadd.f32 %v876, %v1212
      %v1321 = vadd.f32 %v879, %v1215
      %v1322 = vadd.f32 %v884, %v1220
      %v1323 = vadd.f32 %v887, %v1223
      %v1324 = vadd.f32 %v892, %v1228
      %v1325 = vadd.f32 %v895, %v1231
      %v1326 = vadd.f32 %v900, %v1236
      %v1327 = vadd.f32 %v903, %v1239
      %v1328 = vadd.f32 %v908, %v1244
      %v1329 = vadd.f32 %v911, %v1247
      %v1330 = vadd.f32 %v916, %v1252
      %v1331 = vadd.f32 %v919, %v1255
      %v1332 = vadd.f32 %v924, %v1260
      %v1333 = vadd.f32 %v927, %v1263
      %v1334 = vadd.f32 %v932, %v1268
      %v1335 = vadd.f32 %v935, %v1271
      %v1336 = vadd.f32 %v940, %v1276
      %v1337 = vadd.f32 %v943, %v1279
      %v1338 = vadd.f32 %v948, %v1284
      %v1339 = vadd.f32 %v951, %v1287
      %v1340 = vadd.f32 %v956, %v1292
      %v1341 = vadd.f32 %v959, %v1295
      %v1342 = vadd.f32 %v964, %v1300
      %v1343 = vadd.f32 %v967, %v1303
      %v1344 = vadd.f32 %v972, %v1308
      %v1345 = vadd.f32 %v975, %v1311
      %v1346 = vld [vmem:[%s2] sm:$0x1]
      %v1348 = vlaneseq
      %v1349 = vshrl.u32 %v1348, 7
      %v1350 = vsub.s32 0, %v1349
      %v1351 = vrot.slane %v1346, %v1350
      %v1353 = vadd.f32 %v1314, %v1351
      %v1354 = vadd.f32 %v1315, %v1351
      %v1355 = vadd.f32 %v1316, %v1351
      %v1356 = vadd.f32 %v1317, %v1351
      %v1357 = vadd.f32 %v1318, %v1351
      %v1358 = vadd.f32 %v1319, %v1351
      %v1359 = vadd.f32 %v1320, %v1351
      %v1360 = vadd.f32 %v1321, %v1351
      %v1361 = vadd.f32 %v1322, %v1351
      %v1362 = vadd.f32 %v1323, %v1351
      %v1363 = vadd.f32 %v1324, %v1351
      %v1364 = vadd.f32 %v1325, %v1351
      %v1365 = vadd.f32 %v1326, %v1351
      %v1366 = vadd.f32 %v1327, %v1351
      %v1367 = vadd.f32 %v1328, %v1351
      %v1368 = vadd.f32 %v1329, %v1351
      %v1369 = vadd.f32 %v1330, %v1351
      %v1370 = vadd.f32 %v1331, %v1351
      %v1371 = vadd.f32 %v1332, %v1351
      %v1372 = vadd.f32 %v1333, %v1351
      %v1373 = vadd.f32 %v1334, %v1351
      %v1374 = vadd.f32 %v1335, %v1351
      %v1375 = vadd.f32 %v1336, %v1351
      %v1376 = vadd.f32 %v1337, %v1351
      %v1377 = vadd.f32 %v1338, %v1351
      %v1378 = vadd.f32 %v1339, %v1351
      %v1379 = vadd.f32 %v1340, %v1351
      %v1380 = vadd.f32 %v1341, %v1351
      %v1381 = vadd.f32 %v1342, %v1351
      %v1382 = vadd.f32 %v1343, %v1351
      %v1383 = vadd.f32 %v1344, %v1351
      %v1384 = vadd.f32 %v1345, %v1351
      %v1385 = vmax.f32 %v1353, 0.0
      %v1386 = vmax.f32 %v1354, 0.0
      %v1387 = vmax.f32 %v1355, 0.0
      %v1388 = vmax.f32 %v1356, 0.0
      %v1389 = vmax.f32 %v1357, 0.0
      %v1390 = vmax.f32 %v1358, 0.0
      %v1391 = vmax.f32 %v1359, 0.0
      %v1392 = vmax.f32 %v1360, 0.0
      %v1393 = vmax.f32 %v1361, 0.0
      %v1394 = vmax.f32 %v1362, 0.0
      %v1395 = vmax.f32 %v1363, 0.0
      %v1396 = vmax.f32 %v1364, 0.0
      %v1397 = vmax.f32 %v1365, 0.0
      %v1398 = vmax.f32 %v1366, 0.0
      %v1399 = vmax.f32 %v1367, 0.0
      %v1400 = vmax.f32 %v1368, 0.0
      %v1401 = vmax.f32 %v1369, 0.0
      %v1402 = vmax.f32 %v1370, 0.0
      %v1403 = vmax.f32 %v1371, 0.0
      %v1404 = vmax.f32 %v1372, 0.0
      %v1405 = vmax.f32 %v1373, 0.0
      %v1406 = vmax.f32 %v1374, 0.0
      %v1407 = vmax.f32 %v1375, 0.0
      %v1408 = vmax.f32 %v1376, 0.0
      %v1409 = vmax.f32 %v1377, 0.0
      %v1410 = vmax.f32 %v1378, 0.0
      %v1411 = vmax.f32 %v1379, 0.0
      %v1412 = vmax.f32 %v1380, 0.0
      %v1413 = vmax.f32 %v1381, 0.0
      %v1414 = vmax.f32 %v1382, 0.0
      %v1415 = vmax.f32 %v1383, 0.0
      %v1416 = vmax.f32 %v1384, 0.0
      %v1417 = vpack.c.bf16 %v1386, %v1385
      %v1418 = vpack.c.bf16 %v1388, %v1387
      %v1419 = vpack.c.bf16 %v1390, %v1389
      %v1420 = vpack.c.bf16 %v1392, %v1391
      %v1421 = vpack.c.bf16 %v1394, %v1393
      %v1422 = vpack.c.bf16 %v1396, %v1395
      %v1423 = vpack.c.bf16 %v1398, %v1397
      %v1424 = vpack.c.bf16 %v1400, %v1399
      %v1425 = vpack.c.bf16 %v1402, %v1401
      %v1426 = vpack.c.bf16 %v1404, %v1403
      %v1427 = vpack.c.bf16 %v1406, %v1405
      %v1428 = vpack.c.bf16 %v1408, %v1407
      %v1429 = vpack.c.bf16 %v1410, %v1409
      %v1430 = vpack.c.bf16 %v1412, %v1411
      %v1431 = vpack.c.bf16 %v1414, %v1413
      %v1432 = vpack.c.bf16 %v1416, %v1415
      %v1433 = vld [vmem:[%s3] sm:$0xf]
      %v1434 = vld [vmem:[%s3 + $0x4] sm:$0xf]
      %v1435 = vld [vmem:[%s3 + $0x8] sm:$0xf]
      %v1436 = vld [vmem:[%s3 + $0xc] sm:$0xf]
      %v1437 = vld [vmem:[%s3 + $0x10] sm:$0xf]
      %v1438 = vld [vmem:[%s3 + $0x14] sm:$0xf]
      %v1439 = vld [vmem:[%s3 + $0x18] sm:$0xf]
      %v1440 = vld [vmem:[%s3 + $0x1c] sm:$0xf]
      %v1441 = vld [vmem:[%s3 + $0x20] sm:$0xf]
      %v1442 = vld [vmem:[%s3 + $0x24] sm:$0xf]
      %v1443 = vld [vmem:[%s3 + $0x28] sm:$0xf]
      %v1444 = vld [vmem:[%s3 + $0x2c] sm:$0xf]
      %v1445 = vld [vmem:[%s3 + $0x30] sm:$0xf]
      %v1446 = vld [vmem:[%s3 + $0x34] sm:$0xf]
      %v1447 = vld [vmem:[%s3 + $0x38] sm:$0xf]
      %v1448 = vld [vmem:[%s3 + $0x3c] sm:$0xf]
      %v1449 = vld [vmem:[%s4] sm:$0x1]
      %v1451 = vlaneseq
      %v1452 = vshrl.u32 %v1451, 7
      %v1453 = vsub.s32 0, %v1452
      %v1454 = vrot.slane %v1449, %v1453
      %v1472 = vunpack.c.l.b16 %v1433
      %v1473 = vunpack.c.l.b16 %v1434
      %v1474 = vunpack.c.l.b16 %v1435
      %v1475 = vunpack.c.l.b16 %v1436
      %v1476 = vunpack.c.l.b16 %v1437
      %v1477 = vunpack.c.l.b16 %v1438
      %v1478 = vunpack.c.l.b16 %v1439
      %v1479 = vunpack.c.l.b16 %v1440
      %v1480 = vunpack.c.l.b16 %v1441
      %v1481 = vunpack.c.l.b16 %v1442
      %v1482 = vunpack.c.l.b16 %v1443
      %v1483 = vunpack.c.l.b16 %v1444
      %v1484 = vunpack.c.l.b16 %v1445
      %v1485 = vunpack.c.l.b16 %v1446
      %v1486 = vunpack.c.l.b16 %v1447
      %v1487 = vunpack.c.l.b16 %v1448
      %v1488 = vpack.c.b16 %v1473, %v1472
      %v1489 = vpack.c.b16 %v1475, %v1474
      %v1490 = vpack.c.b16 %v1477, %v1476
      %v1491 = vpack.c.b16 %v1479, %v1478
      %v1492 = vpack.c.b16 %v1481, %v1480
      %v1493 = vpack.c.b16 %v1483, %v1482
      %v1494 = vpack.c.b16 %v1485, %v1484
      %v1495 = vpack.c.b16 %v1487, %v1486
      %1504 = vmatprep.subr.bf16.mxu0 0
      %1505 = vmatpush1.bf16.msra.mxu0 %v1495
      %1506 = vmatprep.subr.bf16.mxu0 0
      %1507 = vmatpush1.bf16.msra.mxu0 %v1494
      %1508 = vmatprep.subr.bf16.mxu0 0
      %1509 = vmatpush1.bf16.msra.mxu0 %v1493
      %1510 = vmatprep.subr.bf16.mxu0 0
      %1511 = vmatpush1.bf16.msra.mxu0 %v1492
      %1512 = vmatprep.subr.bf16.mxu0 0
      %1513 = vmatpush1.bf16.msra.mxu0 %v1491
      %1514 = vmatprep.subr.bf16.mxu0 0
      %1515 = vmatpush1.bf16.msra.mxu0 %v1490
      %1516 = vmatprep.subr.bf16.mxu0 0
      %1517 = vmatpush1.bf16.msra.mxu0 %v1489
      %1518 = vmatprep.subr.bf16.mxu0 0
      %1519 = vmatpush1.bf16.msra.mxu0 %v1488
      %1520 = vmatprep.subr.bf16.mxu0 0
      %1521 = vmatpush2.bf16.msra.mxu0 0
      %1522 = vmatprep.subr.bf16.mxu0 0
      %1523 = vmatpush2.bf16.msra.mxu0 0
      %1524 = vmatprep.subr.bf16.mxu0 0
      %1525 = vmatpush2.bf16.msra.mxu0 0
      %1526 = vmatprep.subr.bf16.mxu0 0
      %1527 = vmatpush2.bf16.msra.mxu0 0
      %1528 = vmatprep.subr.bf16.mxu0 0
      %1529 = vmatpush2.bf16.msra.mxu0 0
      %1530 = vmatprep.subr.bf16.mxu0 0
      %1531 = vmatpush2.bf16.msra.mxu0 0
      %1532 = vmatprep.subr.bf16.mxu0 0
      %1533 = vmatpush2.bf16.msra.mxu0 0
      %1534 = vmatprep.subr.bf16.mxu0 0
      %1535 = vmatpush2.bf16.msra.mxu0 0
      %1536 = vmatprep.mubr.bf16.mxu0 0
      %1537 = vmatmul.mubr.bf16.gmra.mxu0 %v1417
      %v1538 = vpop.f32.mrf.mxu0
      %v1539 = vadd.f32 %v1454, %v1538
      %v1540 = vpop.f32.mrf.mxu0
      %v1541 = vpop.f32.mrf.mxu0
      %v1542 = vadd.f32 %v1454, %v1541
      %v1543 = vpop.f32.mrf.mxu0
      %1544 = vmatprep.mubr.bf16.mxu0 0
      %1545 = vmatmul.mubr.bf16.gmra.mxu0 %v1418
      %v1546 = vpop.f32.mrf.mxu0
      %v1547 = vadd.f32 %v1454, %v1546
      %v1548 = vpop.f32.mrf.mxu0
      %v1549 = vpop.f32.mrf.mxu0
      %v1550 = vadd.f32 %v1454, %v1549
      %v1551 = vpop.f32.mrf.mxu0
      %1552 = vmatprep.mubr.bf16.mxu0 0
      %1553 = vmatmul.mubr.bf16.gmra.mxu0 %v1419
      %v1554 = vpop.f32.mrf.mxu0
      %v1555 = vadd.f32 %v1454, %v1554
      %v1556 = vpop.f32.mrf.mxu0
      %v1557 = vpop.f32.mrf.mxu0
      %v1558 = vadd.f32 %v1454, %v1557
      %v1559 = vpop.f32.mrf.mxu0
      %1560 = vmatprep.mubr.bf16.mxu0 0
      %1561 = vmatmul.mubr.bf16.gmra.mxu0 %v1420
      %v1562 = vpop.f32.mrf.mxu0
      %v1563 = vadd.f32 %v1454, %v1562
      %v1564 = vpop.f32.mrf.mxu0
      %v1565 = vpop.f32.mrf.mxu0
      %v1566 = vadd.f32 %v1454, %v1565
      %v1567 = vpop.f32.mrf.mxu0
      %1568 = vmatprep.mubr.bf16.mxu0 0
      %1569 = vmatmul.mubr.bf16.gmra.mxu0 %v1421
      %v1570 = vpop.f32.mrf.mxu0
      %v1571 = vadd.f32 %v1454, %v1570
      %v1572 = vpop.f32.mrf.mxu0
      %v1573 = vpop.f32.mrf.mxu0
      %v1574 = vadd.f32 %v1454, %v1573
      %v1575 = vpop.f32.mrf.mxu0
      %1576 = vmatprep.mubr.bf16.mxu0 0
      %1577 = vmatmul.mubr.bf16.gmra.mxu0 %v1422
      %v1578 = vpop.f32.mrf.mxu0
      %v1579 = vadd.f32 %v1454, %v1578
      %v1580 = vpop.f32.mrf.mxu0
      %v1581 = vpop.f32.mrf.mxu0
      %v1582 = vadd.f32 %v1454, %v1581
      %v1583 = vpop.f32.mrf.mxu0
      %1584 = vmatprep.mubr.bf16.mxu0 0
      %1585 = vmatmul.mubr.bf16.gmra.mxu0 %v1423
      %v1586 = vpop.f32.mrf.mxu0
      %v1587 = vadd.f32 %v1454, %v1586
      %v1588 = vpop.f32.mrf.mxu0
      %v1589 = vpop.f32.mrf.mxu0
      %v1590 = vadd.f32 %v1454, %v1589
      %v1591 = vpop.f32.mrf.mxu0
      %1592 = vmatprep.mubr.bf16.mxu0 0
      %1593 = vmatmul.mubr.bf16.gmra.mxu0 %v1424
      %v1594 = vpop.f32.mrf.mxu0
      %v1595 = vadd.f32 %v1454, %v1594
      %v1596 = vpop.f32.mrf.mxu0
      %v1597 = vpop.f32.mrf.mxu0
      %v1598 = vadd.f32 %v1454, %v1597
      %v1599 = vpop.f32.mrf.mxu0
      %1600 = vmatprep.mubr.bf16.mxu0 0
      %1601 = vmatmul.mubr.bf16.gmra.mxu0 %v1425
      %v1602 = vpop.f32.mrf.mxu0
      %v1603 = vadd.f32 %v1454, %v1602
      %v1604 = vpop.f32.mrf.mxu0
      %v1605 = vpop.f32.mrf.mxu0
      %v1606 = vadd.f32 %v1454, %v1605
      %v1607 = vpop.f32.mrf.mxu0
      %1608 = vmatprep.mubr.bf16.mxu0 0
      %1609 = vmatmul.mubr.bf16.gmra.mxu0 %v1426
      %v1610 = vpop.f32.mrf.mxu0
      %v1611 = vadd.f32 %v1454, %v1610
      %v1612 = vpop.f32.mrf.mxu0
      %v1613 = vpop.f32.mrf.mxu0
      %v1614 = vadd.f32 %v1454, %v1613
      %v1615 = vpop.f32.mrf.mxu0
      %1616 = vmatprep.mubr.bf16.mxu0 0
      %1617 = vmatmul.mubr.bf16.gmra.mxu0 %v1427
      %v1618 = vpop.f32.mrf.mxu0
      %v1619 = vadd.f32 %v1454, %v1618
      %v1620 = vpop.f32.mrf.mxu0
      %v1621 = vpop.f32.mrf.mxu0
      %v1622 = vadd.f32 %v1454, %v1621
      %v1623 = vpop.f32.mrf.mxu0
      %1624 = vmatprep.mubr.bf16.mxu0 0
      %1625 = vmatmul.mubr.bf16.gmra.mxu0 %v1428
      %v1626 = vpop.f32.mrf.mxu0
      %v1627 = vadd.f32 %v1454, %v1626
      %v1628 = vpop.f32.mrf.mxu0
      %v1629 = vpop.f32.mrf.mxu0
      %v1630 = vadd.f32 %v1454, %v1629
      %v1631 = vpop.f32.mrf.mxu0
      %1632 = vmatprep.mubr.bf16.mxu0 0
      %1633 = vmatmul.mubr.bf16.gmra.mxu0 %v1429
      %v1634 = vpop.f32.mrf.mxu0
      %v1635 = vadd.f32 %v1454, %v1634
      %v1636 = vpop.f32.mrf.mxu0
      %v1637 = vpop.f32.mrf.mxu0
      %v1638 = vadd.f32 %v1454, %v1637
      %v1639 = vpop.f32.mrf.mxu0
      %1640 = vmatprep.mubr.bf16.mxu0 0
      %1641 = vmatmul.mubr.bf16.gmra.mxu0 %v1430
      %v1642 = vpop.f32.mrf.mxu0
      %v1643 = vadd.f32 %v1454, %v1642
      %v1644 = vpop.f32.mrf.mxu0
      %v1645 = vpop.f32.mrf.mxu0
      %v1646 = vadd.f32 %v1454, %v1645
      %v1647 = vpop.f32.mrf.mxu0
      %1648 = vmatprep.mubr.bf16.mxu0 0
      %1649 = vmatmul.mubr.bf16.gmra.mxu0 %v1431
      %v1650 = vpop.f32.mrf.mxu0
      %v1651 = vadd.f32 %v1454, %v1650
      %v1652 = vpop.f32.mrf.mxu0
      %v1653 = vpop.f32.mrf.mxu0
      %v1654 = vadd.f32 %v1454, %v1653
      %v1655 = vpop.f32.mrf.mxu0
      %1656 = vmatprep.mubr.bf16.mxu0 0
      %1657 = vmatmul.mubr.bf16.gmra.mxu0 %v1432
      %v1658 = vpop.f32.mrf.mxu0
      %v1659 = vadd.f32 %v1454, %v1658
      %v1660 = vpop.f32.mrf.mxu0
      %v1661 = vpop.f32.mrf.mxu0
      %v1662 = vadd.f32 %v1454, %v1661
      %v1663 = vpop.f32.mrf.mxu0
      %1664 = vdwg.mxu0
      %v1665 = vmax.f32 %v1539, 0.0
      %v1666 = vmax.f32 %v1542, 0.0
      %v1667 = vmax.f32 %v1547, 0.0
      %v1668 = vmax.f32 %v1550, 0.0
      %v1669 = vmax.f32 %v1555, 0.0
      %v1670 = vmax.f32 %v1558, 0.0
      %v1671 = vmax.f32 %v1563, 0.0
      %v1672 = vmax.f32 %v1566, 0.0
      %v1673 = vmax.f32 %v1571, 0.0
      %v1674 = vmax.f32 %v1574, 0.0
      %v1675 = vmax.f32 %v1579, 0.0
      %v1676 = vmax.f32 %v1582, 0.0
      %v1677 = vmax.f32 %v1587, 0.0
      %v1678 = vmax.f32 %v1590, 0.0
      %v1679 = vmax.f32 %v1595, 0.0
      %v1680 = vmax.f32 %v1598, 0.0
      %v1681 = vmax.f32 %v1603, 0.0
      %v1682 = vmax.f32 %v1606, 0.0
      %v1683 = vmax.f32 %v1611, 0.0
      %v1684 = vmax.f32 %v1614, 0.0
      %v1685 = vmax.f32 %v1619, 0.0
      %v1686 = vmax.f32 %v1622, 0.0
      %v1687 = vmax.f32 %v1627, 0.0
      %v1688 = vmax.f32 %v1630, 0.0
      %v1689 = vmax.f32 %v1635, 0.0
      %v1690 = vmax.f32 %v1638, 0.0
      %v1691 = vmax.f32 %v1643, 0.0
      %v1692 = vmax.f32 %v1646, 0.0
      %v1693 = vmax.f32 %v1651, 0.0
      %v1694 = vmax.f32 %v1654, 0.0
      %v1695 = vmax.f32 %v1659, 0.0
      %v1696 = vmax.f32 %v1662, 0.0
      %v1697 = vpack.c.bf16 %v1666, %v1665
      %v1698 = vpack.c.bf16 %v1668, %v1667
      %v1699 = vpack.c.bf16 %v1670, %v1669
      %v1700 = vpack.c.bf16 %v1672, %v1671
      %v1701 = vpack.c.bf16 %v1674, %v1673
      %v1702 = vpack.c.bf16 %v1676, %v1675
      %v1703 = vpack.c.bf16 %v1678, %v1677
      %v1704 = vpack.c.bf16 %v1680, %v1679
      %v1705 = vpack.c.bf16 %v1682, %v1681
      %v1706 = vpack.c.bf16 %v1684, %v1683
      %v1707 = vpack.c.bf16 %v1686, %v1685
      %v1708 = vpack.c.bf16 %v1688, %v1687
      %v1709 = vpack.c.bf16 %v1690, %v1689
      %v1710 = vpack.c.bf16 %v1692, %v1691
      %v1711 = vpack.c.bf16 %v1694, %v1693
      %v1712 = vpack.c.bf16 %v1696, %v1695
      %v1713 = vld [vmem:[%s5] sm:$0xf]
      %v1714 = vld [vmem:[%s5 + $0x4] sm:$0xf]
      %v1715 = vld [vmem:[%s5 + $0x8] sm:$0xf]
      %v1716 = vld [vmem:[%s5 + $0xc] sm:$0xf]
      %v1717 = vld [vmem:[%s5 + $0x10] sm:$0xf]
      %v1718 = vld [vmem:[%s5 + $0x14] sm:$0xf]
      %v1719 = vld [vmem:[%s5 + $0x18] sm:$0xf]
      %v1720 = vld [vmem:[%s5 + $0x1c] sm:$0xf]
      %v1721 = vld [vmem:[%s5 + $0x20] sm:$0xf]
      %v1722 = vld [vmem:[%s5 + $0x24] sm:$0xf]
      %v1723 = vld [vmem:[%s5 + $0x28] sm:$0xf]
      %v1724 = vld [vmem:[%s5 + $0x2c] sm:$0xf]
      %v1725 = vld [vmem:[%s5 + $0x30] sm:$0xf]
      %v1726 = vld [vmem:[%s5 + $0x34] sm:$0xf]
      %v1727 = vld [vmem:[%s5 + $0x38] sm:$0xf]
      %v1728 = vld [vmem:[%s5 + $0x3c] sm:$0xf]
      %v1729 = vld [vmem:[%s6] sm:$0x1]
      %v1731 = vlaneseq
      %v1732 = vshrl.u32 %v1731, 7
      %v1733 = vsub.s32 0, %v1732
      %v1734 = vrot.slane %v1729, %v1733
      %v1752 = vunpack.c.l.b16 %v1713
      %v1753 = vunpack.c.l.b16 %v1714
      %v1754 = vunpack.c.l.b16 %v1715
      %v1755 = vunpack.c.l.b16 %v1716
      %v1756 = vunpack.c.l.b16 %v1717
      %v1757 = vunpack.c.l.b16 %v1718
      %v1758 = vunpack.c.l.b16 %v1719
      %v1759 = vunpack.c.l.b16 %v1720
      %v1760 = vunpack.c.l.b16 %v1721
      %v1761 = vunpack.c.l.b16 %v1722
      %v1762 = vunpack.c.l.b16 %v1723
      %v1763 = vunpack.c.l.b16 %v1724
      %v1764 = vunpack.c.l.b16 %v1725
      %v1765 = vunpack.c.l.b16 %v1726
      %v1766 = vunpack.c.l.b16 %v1727
      %v1767 = vunpack.c.l.b16 %v1728
      %v1768 = vpack.c.b16 %v1753, %v1752
      %v1769 = vpack.c.b16 %v1755, %v1754
      %v1770 = vpack.c.b16 %v1757, %v1756
      %v1771 = vpack.c.b16 %v1759, %v1758
      %v1772 = vpack.c.b16 %v1761, %v1760
      %v1773 = vpack.c.b16 %v1763, %v1762
      %v1774 = vpack.c.b16 %v1765, %v1764
      %v1775 = vpack.c.b16 %v1767, %v1766
      %1784 = vmatprep.subr.bf16.mxu0 0
      %1785 = vmatpush1.bf16.msra.mxu0 %v1775
      %1786 = vmatprep.subr.bf16.mxu0 0
      %1787 = vmatpush1.bf16.msra.mxu0 %v1774
      %1788 = vmatprep.subr.bf16.mxu0 0
      %1789 = vmatpush1.bf16.msra.mxu0 %v1773
      %1790 = vmatprep.subr.bf16.mxu0 0
      %1791 = vmatpush1.bf16.msra.mxu0 %v1772
      %1792 = vmatprep.subr.bf16.mxu0 0
      %1793 = vmatpush1.bf16.msra.mxu0 %v1771
      %1794 = vmatprep.subr.bf16.mxu0 0
      %1795 = vmatpush1.bf16.msra.mxu0 %v1770
      %1796 = vmatprep.subr.bf16.mxu0 0
      %1797 = vmatpush1.bf16.msra.mxu0 %v1769
      %1798 = vmatprep.subr.bf16.mxu0 0
      %1799 = vmatpush1.bf16.msra.mxu0 %v1768
      %1800 = vmatprep.subr.bf16.mxu0 0
      %1801 = vmatpush2.bf16.msra.mxu0 0
      %1802 = vmatprep.subr.bf16.mxu0 0
      %1803 = vmatpush2.bf16.msra.mxu0 0
      %1804 = vmatprep.subr.bf16.mxu0 0
      %1805 = vmatpush2.bf16.msra.mxu0 0
      %1806 = vmatprep.subr.bf16.mxu0 0
      %1807 = vmatpush2.bf16.msra.mxu0 0
      %1808 = vmatprep.subr.bf16.mxu0 0
      %1809 = vmatpush2.bf16.msra.mxu0 0
      %1810 = vmatprep.subr.bf16.mxu0 0
      %1811 = vmatpush2.bf16.msra.mxu0 0
      %1812 = vmatprep.subr.bf16.mxu0 0
      %1813 = vmatpush2.bf16.msra.mxu0 0
      %1814 = vmatprep.subr.bf16.mxu0 0
      %1815 = vmatpush2.bf16.msra.mxu0 0
      %1816 = vmatprep.mubr.bf16.mxu0 0
      %1817 = vmatmul.mubr.bf16.gmra.mxu0 %v1697
      %v1818 = vpop.f32.mrf.mxu0
      %v1819 = vadd.f32 %v1734, %v1818
      %v1820 = vpop.f32.mrf.mxu0
      %v1821 = vpop.f32.mrf.mxu0
      %v1822 = vadd.f32 %v1734, %v1821
      %v1823 = vpop.f32.mrf.mxu0
      %1824 = vmatprep.mubr.bf16.mxu0 0
      %1825 = vmatmul.mubr.bf16.gmra.mxu0 %v1698
      %v1826 = vpop.f32.mrf.mxu0
      %v1827 = vadd.f32 %v1734, %v1826
      %v1828 = vpop.f32.mrf.mxu0
      %v1829 = vpop.f32.mrf.mxu0
      %v1830 = vadd.f32 %v1734, %v1829
      %v1831 = vpop.f32.mrf.mxu0
      %1832 = vmatprep.mubr.bf16.mxu0 0
      %1833 = vmatmul.mubr.bf16.gmra.mxu0 %v1699
      %v1834 = vpop.f32.mrf.mxu0
      %v1835 = vadd.f32 %v1734, %v1834
      %v1836 = vpop.f32.mrf.mxu0
      %v1837 = vpop.f32.mrf.mxu0
      %v1838 = vadd.f32 %v1734, %v1837
      %v1839 = vpop.f32.mrf.mxu0
      %1840 = vmatprep.mubr.bf16.mxu0 0
      %1841 = vmatmul.mubr.bf16.gmra.mxu0 %v1700
      %v1842 = vpop.f32.mrf.mxu0
      %v1843 = vadd.f32 %v1734, %v1842
      %v1844 = vpop.f32.mrf.mxu0
      %v1845 = vpop.f32.mrf.mxu0
      %v1846 = vadd.f32 %v1734, %v1845
      %v1847 = vpop.f32.mrf.mxu0
      %1848 = vmatprep.mubr.bf16.mxu0 0
      %1849 = vmatmul.mubr.bf16.gmra.mxu0 %v1701
      %v1850 = vpop.f32.mrf.mxu0
      %v1851 = vadd.f32 %v1734, %v1850
      %v1852 = vpop.f32.mrf.mxu0
      %v1853 = vpop.f32.mrf.mxu0
      %v1854 = vadd.f32 %v1734, %v1853
      %v1855 = vpop.f32.mrf.mxu0
      %1856 = vmatprep.mubr.bf16.mxu0 0
      %1857 = vmatmul.mubr.bf16.gmra.mxu0 %v1702
      %v1858 = vpop.f32.mrf.mxu0
      %v1859 = vadd.f32 %v1734, %v1858
      %v1860 = vpop.f32.mrf.mxu0
      %v1861 = vpop.f32.mrf.mxu0
      %v1862 = vadd.f32 %v1734, %v1861
      %v1863 = vpop.f32.mrf.mxu0
      %1864 = vmatprep.mubr.bf16.mxu0 0
      %1865 = vmatmul.mubr.bf16.gmra.mxu0 %v1703
      %v1866 = vpop.f32.mrf.mxu0
      %v1867 = vadd.f32 %v1734, %v1866
      %v1868 = vpop.f32.mrf.mxu0
      %v1869 = vpop.f32.mrf.mxu0
      %v1870 = vadd.f32 %v1734, %v1869
      %v1871 = vpop.f32.mrf.mxu0
      %1872 = vmatprep.mubr.bf16.mxu0 0
      %1873 = vmatmul.mubr.bf16.gmra.mxu0 %v1704
      %v1874 = vpop.f32.mrf.mxu0
      %v1875 = vadd.f32 %v1734, %v1874
      %v1876 = vpop.f32.mrf.mxu0
      %v1877 = vpop.f32.mrf.mxu0
      %v1878 = vadd.f32 %v1734, %v1877
      %v1879 = vpop.f32.mrf.mxu0
      %1880 = vmatprep.mubr.bf16.mxu0 0
      %1881 = vmatmul.mubr.bf16.gmra.mxu0 %v1705
      %v1882 = vpop.f32.mrf.mxu0
      %v1883 = vadd.f32 %v1734, %v1882
      %v1884 = vpop.f32.mrf.mxu0
      %v1885 = vpop.f32.mrf.mxu0
      %v1886 = vadd.f32 %v1734, %v1885
      %v1887 = vpop.f32.mrf.mxu0
      %1888 = vmatprep.mubr.bf16.mxu0 0
      %1889 = vmatmul.mubr.bf16.gmra.mxu0 %v1706
      %v1890 = vpop.f32.mrf.mxu0
      %v1891 = vadd.f32 %v1734, %v1890
      %v1892 = vpop.f32.mrf.mxu0
      %v1893 = vpop.f32.mrf.mxu0
      %v1894 = vadd.f32 %v1734, %v1893
      %v1895 = vpop.f32.mrf.mxu0
      %1896 = vmatprep.mubr.bf16.mxu0 0
      %1897 = vmatmul.mubr.bf16.gmra.mxu0 %v1707
      %v1898 = vpop.f32.mrf.mxu0
      %v1899 = vadd.f32 %v1734, %v1898
      %v1900 = vpop.f32.mrf.mxu0
      %v1901 = vpop.f32.mrf.mxu0
      %v1902 = vadd.f32 %v1734, %v1901
      %v1903 = vpop.f32.mrf.mxu0
      %1904 = vmatprep.mubr.bf16.mxu0 0
      %1905 = vmatmul.mubr.bf16.gmra.mxu0 %v1708
      %v1906 = vpop.f32.mrf.mxu0
      %v1907 = vadd.f32 %v1734, %v1906
      %v1908 = vpop.f32.mrf.mxu0
      %v1909 = vpop.f32.mrf.mxu0
      %v1910 = vadd.f32 %v1734, %v1909
      %v1911 = vpop.f32.mrf.mxu0
      %1912 = vmatprep.mubr.bf16.mxu0 0
      %1913 = vmatmul.mubr.bf16.gmra.mxu0 %v1709
      %v1914 = vpop.f32.mrf.mxu0
      %v1915 = vadd.f32 %v1734, %v1914
      %v1916 = vpop.f32.mrf.mxu0
      %v1917 = vpop.f32.mrf.mxu0
      %v1918 = vadd.f32 %v1734, %v1917
      %v1919 = vpop.f32.mrf.mxu0
      %1920 = vmatprep.mubr.bf16.mxu0 0
      %1921 = vmatmul.mubr.bf16.gmra.mxu0 %v1710
      %v1922 = vpop.f32.mrf.mxu0
      %v1923 = vadd.f32 %v1734, %v1922
      %v1924 = vpop.f32.mrf.mxu0
      %v1925 = vpop.f32.mrf.mxu0
      %v1926 = vadd.f32 %v1734, %v1925
      %v1927 = vpop.f32.mrf.mxu0
      %1928 = vmatprep.mubr.bf16.mxu0 0
      %1929 = vmatmul.mubr.bf16.gmra.mxu0 %v1711
      %v1930 = vpop.f32.mrf.mxu0
      %v1931 = vadd.f32 %v1734, %v1930
      %v1932 = vpop.f32.mrf.mxu0
      %v1933 = vpop.f32.mrf.mxu0
      %v1934 = vadd.f32 %v1734, %v1933
      %v1935 = vpop.f32.mrf.mxu0
      %1936 = vmatprep.mubr.bf16.mxu0 0
      %1937 = vmatmul.mubr.bf16.gmra.mxu0 %v1712
      %v1938 = vpop.f32.mrf.mxu0
      %v1939 = vadd.f32 %v1734, %v1938
      %v1940 = vpop.f32.mrf.mxu0
      %v1941 = vpop.f32.mrf.mxu0
      %v1942 = vadd.f32 %v1734, %v1941
      %v1943 = vpop.f32.mrf.mxu0
      %1944 = vdwg.mxu0
      %v1945 = vmax.f32 %v1819, 0.0
      %v1946 = vmax.f32 %v1822, 0.0
      %v1947 = vmax.f32 %v1827, 0.0
      %v1948 = vmax.f32 %v1830, 0.0
      %v1949 = vmax.f32 %v1835, 0.0
      %v1950 = vmax.f32 %v1838, 0.0
      %v1951 = vmax.f32 %v1843, 0.0
      %v1952 = vmax.f32 %v1846, 0.0
      %v1953 = vmax.f32 %v1851, 0.0
      %v1954 = vmax.f32 %v1854, 0.0
      %v1955 = vmax.f32 %v1859, 0.0
      %v1956 = vmax.f32 %v1862, 0.0
      %v1957 = vmax.f32 %v1867, 0.0
      %v1958 = vmax.f32 %v1870, 0.0
      %v1959 = vmax.f32 %v1875, 0.0
      %v1960 = vmax.f32 %v1878, 0.0
      %v1961 = vmax.f32 %v1883, 0.0
      %v1962 = vmax.f32 %v1886, 0.0
      %v1963 = vmax.f32 %v1891, 0.0
      %v1964 = vmax.f32 %v1894, 0.0
      %v1965 = vmax.f32 %v1899, 0.0
      %v1966 = vmax.f32 %v1902, 0.0
      %v1967 = vmax.f32 %v1907, 0.0
      %v1968 = vmax.f32 %v1910, 0.0
      %v1969 = vmax.f32 %v1915, 0.0
      %v1970 = vmax.f32 %v1918, 0.0
      %v1971 = vmax.f32 %v1923, 0.0
      %v1972 = vmax.f32 %v1926, 0.0
      %v1973 = vmax.f32 %v1931, 0.0
      %v1974 = vmax.f32 %v1934, 0.0
      %v1975 = vmax.f32 %v1939, 0.0
      %v1976 = vmax.f32 %v1942, 0.0
      %v1977 = vpack.c.bf16 %v1946, %v1945
      %v1978 = vpack.c.bf16 %v1948, %v1947
      %v1979 = vpack.c.bf16 %v1950, %v1949
      %v1980 = vpack.c.bf16 %v1952, %v1951
      %v1981 = vpack.c.bf16 %v1954, %v1953
      %v1982 = vpack.c.bf16 %v1956, %v1955
      %v1983 = vpack.c.bf16 %v1958, %v1957
      %v1984 = vpack.c.bf16 %v1960, %v1959
      %v1985 = vpack.c.bf16 %v1962, %v1961
      %v1986 = vpack.c.bf16 %v1964, %v1963
      %v1987 = vpack.c.bf16 %v1966, %v1965
      %v1988 = vpack.c.bf16 %v1968, %v1967
      %v1989 = vpack.c.bf16 %v1970, %v1969
      %v1990 = vpack.c.bf16 %v1972, %v1971
      %v1991 = vpack.c.bf16 %v1974, %v1973
      %v1992 = vpack.c.bf16 %v1976, %v1975
      %v2009 = vunpack.c.l.b16 %v1977
      %v2010 = vunpack.c.h.b16 %v1977
      %v2011 = vunpack.c.l.b16 %v1978
      %v2012 = vunpack.c.h.b16 %v1978
      %v2013 = vunpack.c.l.b16 %v1979
      %v2014 = vunpack.c.h.b16 %v1979
      %v2015 = vunpack.c.l.b16 %v1980
      %v2016 = vunpack.c.h.b16 %v1980
      %v2017 = vunpack.c.l.b16 %v1981
      %v2018 = vunpack.c.h.b16 %v1981
      %v2019 = vunpack.c.l.b16 %v1982
      %v2020 = vunpack.c.h.b16 %v1982
      %v2021 = vunpack.c.l.b16 %v1983
      %v2022 = vunpack.c.h.b16 %v1983
      %v2023 = vunpack.c.l.b16 %v1984
      %v2024 = vunpack.c.h.b16 %v1984
      %v2025 = vunpack.c.l.b16 %v1985
      %v2026 = vunpack.c.h.b16 %v1985
      %v2027 = vunpack.c.l.b16 %v1986
      %v2028 = vunpack.c.h.b16 %v1986
      %v2029 = vunpack.c.l.b16 %v1987
      %v2030 = vunpack.c.h.b16 %v1987
      %v2031 = vunpack.c.l.b16 %v1988
      %v2032 = vunpack.c.h.b16 %v1988
      %v2033 = vunpack.c.l.b16 %v1989
      %v2034 = vunpack.c.h.b16 %v1989
      %v2035 = vunpack.c.l.b16 %v1990
      %v2036 = vunpack.c.h.b16 %v1990
      %v2037 = vunpack.c.l.b16 %v1991
      %v2038 = vunpack.c.h.b16 %v1991
      %v2039 = vunpack.c.l.b16 %v1992
      %v2040 = vunpack.c.h.b16 %v1992
      %v2041 = vpack.c.b16 %v2009, %v2009
      %v2042 = vpack.c.b16 %v2010, %v2010
      %v2043 = vpack.c.b16 %v2011, %v2011
      %v2044 = vpack.c.b16 %v2012, %v2012
      %v2045 = vpack.c.b16 %v2013, %v2013
      %v2046 = vpack.c.b16 %v2014, %v2014
      %v2047 = vpack.c.b16 %v2015, %v2015
      %v2048 = vpack.c.b16 %v2016, %v2016
      %v2049 = vpack.c.b16 %v2017, %v2017
      %v2050 = vpack.c.b16 %v2018, %v2018
      %v2051 = vpack.c.b16 %v2019, %v2019
      %v2052 = vpack.c.b16 %v2020, %v2020
      %v2053 = vpack.c.b16 %v2021, %v2021
      %v2054 = vpack.c.b16 %v2022, %v2022
      %v2055 = vpack.c.b16 %v2023, %v2023
      %v2056 = vpack.c.b16 %v2024, %v2024
      %v2057 = vpack.c.b16 %v2025, %v2025
      %v2058 = vpack.c.b16 %v2026, %v2026
      %v2059 = vpack.c.b16 %v2027, %v2027
      %v2060 = vpack.c.b16 %v2028, %v2028
      %v2061 = vpack.c.b16 %v2029, %v2029
      %v2062 = vpack.c.b16 %v2030, %v2030
      %v2063 = vpack.c.b16 %v2031, %v2031
      %v2064 = vpack.c.b16 %v2032, %v2032
      %v2065 = vpack.c.b16 %v2033, %v2033
      %v2066 = vpack.c.b16 %v2034, %v2034
      %v2067 = vpack.c.b16 %v2035, %v2035
      %v2068 = vpack.c.b16 %v2036, %v2036
      %v2069 = vpack.c.b16 %v2037, %v2037
      %v2070 = vpack.c.b16 %v2038, %v2038
      %v2071 = vpack.c.b16 %v2039, %v2039
      %v2072 = vpack.c.b16 %v2040, %v2040
      %2105 = vst [vmem:[%s302] sm:$0xf] %v2041
      %2106 = vst [vmem:[%s302 + $0x4] sm:$0xf] %v2042
      %2107 = vst [vmem:[%s302 + $0x8] sm:$0xf] %v2043
      %2108 = vst [vmem:[%s302 + $0xc] sm:$0xf] %v2044
      %2109 = vst [vmem:[%s302 + $0x10] sm:$0xf] %v2045
      %2110 = vst [vmem:[%s302 + $0x14] sm:$0xf] %v2046
      %2111 = vst [vmem:[%s302 + $0x18] sm:$0xf] %v2047
      %2112 = vst [vmem:[%s302 + $0x1c] sm:$0xf] %v2048
      %2113 = vst [vmem:[%s302 + $0x20] sm:$0xf] %v2049
      %2114 = vst [vmem:[%s302 + $0x24] sm:$0xf] %v2050
      %2115 = vst [vmem:[%s302 + $0x28] sm:$0xf] %v2051
      %2116 = vst [vmem:[%s302 + $0x2c] sm:$0xf] %v2052
      %2117 = vst [vmem:[%s302 + $0x30] sm:$0xf] %v2053
      %2118 = vst [vmem:[%s302 + $0x34] sm:$0xf] %v2054
      %2119 = vst [vmem:[%s302 + $0x38] sm:$0xf] %v2055
      %2120 = vst [vmem:[%s302 + $0x3c] sm:$0xf] %v2056
      %2121 = vst [vmem:[%s302 + $0x40] sm:$0xf] %v2057
      %2122 = vst [vmem:[%s302 + $0x44] sm:$0xf] %v2058
      %2123 = vst [vmem:[%s302 + $0x48] sm:$0xf] %v2059
      %2124 = vst [vmem:[%s302 + $0x4c] sm:$0xf] %v2060
      %2125 = vst [vmem:[%s302 + $0x50] sm:$0xf] %v2061
      %2126 = vst [vmem:[%s302 + $0x54] sm:$0xf] %v2062
      %2127 = vst [vmem:[%s302 + $0x58] sm:$0xf] %v2063
      %2128 = vst [vmem:[%s302 + $0x5c] sm:$0xf] %v2064
      %2129 = vst [vmem:[%s302 + $0x60] sm:$0xf] %v2065
      %2130 = vst [vmem:[%s302 + $0x64] sm:$0xf] %v2066
      %2131 = vst [vmem:[%s302 + $0x68] sm:$0xf] %v2067
      %2132 = vst [vmem:[%s302 + $0x6c] sm:$0xf] %v2068
      %2133 = vst [vmem:[%s302 + $0x70] sm:$0xf] %v2069
      %2134 = vst [vmem:[%s302 + $0x74] sm:$0xf] %v2070
      %2135 = vst [vmem:[%s302 + $0x78] sm:$0xf] %v2071
      %2136 = vst [vmem:[%s302 + $0x7c] sm:$0xf] %v2072
      %s2137 = smul.u32 16, %s23
      %p2138 = scmp.lt.s32.totalorder %s22, 1
      %s2139 = scalar_select %p2138, %s22, 1
      %p2140 = scmp.lt.s32.totalorder %s2137, 15
      %s2141 = scalar_select %p2140, %s2137, 15
      %s2142 = smul.addr %s2141, 2
      %s2143 = smul.addr %s2139, 32
      %s2144 = sadd.s32 %s2142, %s2143
      %s2145 = smul.addr %s2144, 4
      %s2146 = scalar_lea.vmem %s7, %s2145
      // Predicated region
      $region49: #{nin_block_forward.1} parent=47 // pred_check
        %p2147 = pneg %p202
      $region50: #{nin_block_forward.1} parent=47 // pred_check_branch
        %2149 = sbr.rel (%p2147) target = $region52
      $region51: #{nin_block_forward.1} parent=47 // pred_region
        %s2150 = smul.u32 16, %s23
      $region52: #{nin_block_forward.1} parent=47 // pred_fallthru
        _
    $region48: #{nin_block_forward.1} parent=5 // pred_fallthru
      _
    %p2151 = scmp.le.s32.totalorder 2, %s13
    // Predicated region
    $region53: #{nin_block_forward.1} parent=5 // pred_check
      %p2152 = pneg %p2151
    $region54: #{nin_block_forward.1} parent=5 // pred_check_branch
      %2154 = sbr.rel (%p2152) target = $region56
    $region55: #{nin_block_forward.1} parent=5 // pred_region
      %s2155 = ssub.s32 %s13, 2
      // Predicated region
      $region57: #{nin_block_forward.1} parent=55 // pred_check
        %p2156 = pneg %p208
      $region58: #{nin_block_forward.1} parent=55 // pred_check_branch
        %2158 = sbr.rel (%p2156) target = $region60
      $region59: #{nin_block_forward.1} parent=55 // pred_region
        %s2159 = smul.u32 16, %s25
        %p2160 = scmp.lt.s32.totalorder %s24, 1
        %s2161 = scalar_select %p2160, %s24, 1
        %p2162 = scmp.lt.s32.totalorder %s2159, 15
        %s2163 = scalar_select %p2162, %s2159, 15
        %s2164 = smul.addr %s2163, 2
        %s2165 = smul.addr %s2161, 32
        %s2166 = sadd.s32 %s2164, %s2165
        %s2167 = smul.addr %s2166, 4
        %s2168 = scalar_lea.vmem %s7, %s2167
      $region60: #{nin_block_forward.1} parent=55 // pred_fallthru
        _
    $region56: #{nin_block_forward.1} parent=5 // pred_fallthru
      _
  $region6: #{nin_block_forward.1} parent=0 // loop_footer
    %s17 = sadd.s32 1, %s13
  $region7: #{nin_block_forward.1} parent=0 // loop_footer_branch
    %12 = sbr.rel target = $region3
  $region8: #{nin_block_forward.1} parent=0 // loop_exit
    _

</llo_original>
